<compile_context>
chip_gen: v7x
topology: tpu7x:2x2x1
jax: 0.10.0
libtpu: 0.0.40
codegen_flags: <defaults>
</compile_context>

<pallas_src>
import functools

import jax
import jax.numpy as jnp
from jax.experimental import pallas as pl
from jax.experimental.pallas import tpu as pltpu

EPS = 1e-6  # LayerNorm2d eps (NAFNet default)


# ---------------------------------------------------------------------------
# Kernel
# ---------------------------------------------------------------------------
def _naf_ffn_kernel(y_ref, w4a_ref, b4a_ref, w4b_ref, b4b_ref, w5_ref, b5_ref,
                    o_ref, *, compute_dtype, precision):
    # y_ref: (C, T) slab -- channels on sublanes, pixels on lanes.
    y = y_ref[...].astype(jnp.float32)

    # ---- LayerNorm2d over the channel (sublane) axis, per pixel ----
    # One-pass moments (E[y^2] - mu^2).  Out-of-bounds lanes of a ragged last
    # block may produce garbage/NaN here, but everything is lane-local and the
    # corresponding stores are dropped by Pallas.
    mu = jnp.mean(y, axis=0, keepdims=True)                          # (1, T)
    var = jnp.maximum(jnp.mean(y * y, axis=0, keepdims=True) - mu * mu, 0.0)
    n = ((y - mu) * jax.lax.rsqrt(var + EPS)).astype(compute_dtype)
    # (ln_w / ln_b are folded into W4 / b4 by the wrapper)

    # ---- conv4 (1x1 conv == matmul) + SimpleGate as two half-matmuls ----
    h1 = jnp.dot(w4a_ref[...], n, preferred_element_type=jnp.float32,
                 precision=precision) + b4a_ref[...]
    h2 = jnp.dot(w4b_ref[...], n, preferred_element_type=jnp.float32,
                 precision=precision) + b4b_ref[...]
    g = (h1 * h2).astype(compute_dtype)                              # (half, T)

    # ---- conv5 (1x1 conv == matmul); gamma folded into W5 / b5 ----
    x = jnp.dot(w5_ref[...], g, preferred_element_type=jnp.float32,
                precision=precision) + b5_ref[...]

    # ---- residual: re-read y so the f32 slab isn't live across the matmuls ----
    o_ref[...] = (y_ref[...].astype(jnp.float32) + x).astype(o_ref.dtype)


# ---------------------------------------------------------------------------
# Generation-aware defaults & tile sizing
# ---------------------------------------------------------------------------
def _tpu_defaults():
    """(vmem_limit_bytes, tile_vmem_budget_bytes, matmul_operand_dtype)."""
    kind = ""
    try:
        kind = jax.devices()[0].device_kind.lower()
    except Exception:
        pass
    if "7" in kind:                                   # v7x: 64 MiB VMEM/TC, 2 TCs
        return 48 * 1024 * 1024, 32 * 1024 * 1024, jnp.bfloat16
    if "v6" in kind or "6e" in kind:                  # v6e: 128 MiB VMEM, bf16 VPU
        return 96 * 1024 * 1024, 48 * 1024 * 1024, jnp.bfloat16
    # v5e / v5p / unknown / interpret: conservative tiles, f32 (no bf16 VPU on v5e)
    return 64 * 1024 * 1024, 24 * 1024 * 1024, jnp.float32


def _choose_tile_hw(hw, c, half, n_batch, io_bytes, cmp_bytes, vmem_budget_bytes,
                    target_step_bytes=8 * 1024 * 1024, desired_steps=4):
    """Pixel-tile width: multiple of 128, <= hw, sized from a VMEM budget and an
    HBM-bytes-per-grid-step target, while keeping >= desired_steps grid steps."""
    if hw <= 128:
        return hw                                   # one (lane-padded) block
    # Per-pixel-column VMEM footprint: double-buffered y/out blocks plus the
    # main intermediates (n, h1, h2, g, x / residual in f32).
    per_col = (2 * 2 * c * io_bytes                 # y in + out, x2 pipeline bufs
               + cmp_bytes * (c + half)             # n, g
               + 4 * (2 * half + 2 * c))            # h1, h2, x, residual (f32)
    t_vmem = max(128, (vmem_budget_bytes // max(per_col, 1)) // 128 * 128)
    # Target >= ~8 MiB of in+out HBM traffic per step (amortize ~0.35us/step).
    t_bw = max(128, (target_step_bytes // (2 * c * io_bytes)) // 128 * 128)
    t_cap = (hw // 128) * 128                       # largest 128-multiple <= hw
    t = min(t_vmem, t_bw, t_cap)
    # Keep enough grid steps for megacore sharding (v7x: 2 TCs) + pipelining.
    if n_batch * pl.cdiv(hw, t) < desired_steps:
        per_batch = -(-desired_steps // n_batch)    # ceil
        t_split = pl.cdiv(pl.cdiv(hw, per_batch), 128) * 128
        t = min(t, max(128, t_split))
    return max(128, t)


# ---------------------------------------------------------------------------
# Wrapper
# ---------------------------------------------------------------------------
def naf_feedforward_pallas(y_nchw, params, *, tile_hw=None, compute_dtype=None,
                           vmem_limit_bytes=None, tile_vmem_budget=None):
    """y_nchw: (N, C, H, W). params: dict of weights (see init_params).

    compute_dtype: dtype of the matmul *operands* (accumulation is always f32).
    None -> generation default (bf16 on v6e/v7x, f32 elsewhere).  Activation
    I/O dtype follows y_nchw.dtype, so feeding bf16 activations halves HBM
    traffic if the surrounding model tolerates it.
    """
    N, C, H, W = y_nchw.shape
    ffn_c = params["w4"].shape[0]
    half = ffn_c // 2
    HW = H * W

    auto_limit, auto_budget, auto_cdtype = _tpu_defaults()
    compute_dtype = jnp.dtype(auto_cdtype if compute_dtype is None else compute_dtype)
    vmem_limit_bytes = auto_limit if vmem_limit_bytes is None else vmem_limit_bytes
    tile_vmem_budget = auto_budget if tile_vmem_budget is None else tile_vmem_budget

    io_bytes = jnp.dtype(y_nchw.dtype).itemsize
    cmp_bytes = compute_dtype.itemsize
    # Weight/bias footprint (x2 pipeline buffers) comes out of the tile budget.
    weight_bytes = 2 * ((2 * half * C + C * half) * cmp_bytes + (2 * half + C) * 4)
    if tile_hw is None:
        tile_hw = _choose_tile_hw(
            HW, C, half, N, io_bytes, cmp_bytes,
            max(tile_vmem_budget - weight_bytes, 2 * 1024 * 1024))

    # NCHW -> (N, C, HW): free reshape; NO padding / transpose / extra HBM pass.
    y3d = y_nchw.reshape(N, C, HW)

    # ---- fold LayerNorm affine into conv4 and gamma into conv5; split conv4 ----
    ln_w = params["ln_w"].astype(jnp.float32)
    ln_b = params["ln_b"].astype(jnp.float32)
    gamma = params["gamma"].astype(jnp.float32)
    w4_f32 = params["w4"].astype(jnp.float32)                  # (ffn_c, C)
    w4 = w4_f32 * ln_w[None, :]
    b4 = params["b4"].astype(jnp.float32) + w4_f32 @ ln_b      # (ffn_c,)
    w5 = params["w5"].astype(jnp.float32) * gamma[:, None]     # (C, half)
    b5 = (params["b5"].astype(jnp.float32) * gamma)[:, None]   # (C, 1)

    w4a = w4[:half].astype(compute_dtype)                      # (half, C)
    w4b = w4[half:].astype(compute_dtype)                      # (half, C)
    b4a = b4[:half, None]                                      # (half, 1) f32
    b4b = b4[half:, None]                                      # (half, 1) f32
    w5c = w5.astype(compute_dtype)                             # (C, half)

    precision = (jax.lax.Precision.HIGHEST if compute_dtype == jnp.float32
                 else jax.lax.Precision.DEFAULT)

    grid = (N, pl.cdiv(HW, tile_hw))   # ragged last pixel block handled by Pallas

    def wspec(rows, cols):
        # Grid-invariant weight/bias blocks.  (pipeline_mode=pl.Buffered(1)
        # would single-buffer them; only matters for C >= 256.)
        return pl.BlockSpec((rows, cols), lambda n, p: (0, 0))

    out3d = pl.pallas_call(
        functools.partial(_naf_ffn_kernel, compute_dtype=compute_dtype,
                          precision=precision),
        out_shape=jax.ShapeDtypeStruct((N, C, HW), y_nchw.dtype),
        grid_spec=pltpu.PrefetchScalarGridSpec(
            num_scalar_prefetch=0,
            grid=grid,
            in_specs=[
                pl.BlockSpec((None, C, tile_hw), lambda n, p: (n, 0, p)),  # y slab
                wspec(half, C),      # w4a (ln_w folded)
                wspec(half, 1),      # b4a (ln_b folded)
                wspec(half, C),      # w4b
                wspec(half, 1),      # b4b
                wspec(C, half),      # w5  (gamma folded)
                wspec(C, 1),         # b5  (gamma folded)
            ],
            out_specs=pl.BlockSpec((None, C, tile_hw), lambda n, p: (n, 0, p)),
        ),
        compiler_params=pltpu.CompilerParams(
            dimension_semantics=("parallel", "parallel"),
            vmem_limit_bytes=vmem_limit_bytes),
    )(y3d, w4a, b4a, w4b, b4b, w5c, b5)

    return out3d.reshape(N, C, H, W)


# ---------------------------------------------------------------------------
# Synthetic params + pure-JAX reference
# ---------------------------------------------------------------------------
def init_params(key, dim, ffn_expansion_factor):
    """Deterministic synthetic init matching NAFFeedForward parameter shapes."""
    c = dim
    ffn_c = ffn_expansion_factor * c
    k1, k2, k3, k4, k5 = jax.random.split(key, 5)
    return {
        # LayerNorm2d(c): standard init (weight ones, bias zeros)
        "ln_w": jnp.ones((c,), jnp.float32),
        "ln_b": jnp.zeros((c,), jnp.float32),
        # conv4: torch weight (ffn_c, c, 1, 1) -> (ffn_c, c)
        "w4": jax.random.normal(k1, (ffn_c, c), jnp.float32) * 0.1,
        "b4": jax.random.normal(k2, (ffn_c,), jnp.float32) * 0.1,
        # conv5: torch weight (c, ffn_c//2, 1, 1) -> (c, ffn_c//2)
        "w5": jax.random.normal(k3, (c, ffn_c // 2), jnp.float32) * 0.1,
        "b5": jax.random.normal(k4, (c,), jnp.float32) * 0.1,
        # gamma: torch init is zeros (=> output == input); use random values so
        # the FFN path is actually exercised.  Forward semantics are unchanged.
        "gamma": jax.random.normal(k5, (c,), jnp.float32) * 0.1,
    }


def naf_feedforward_ref(y_nchw, params):
    """Pure-JAX reference mirroring the PyTorch forward (no folding/splitting)."""
    y = y_nchw.astype(jnp.float32)
    mu = jnp.mean(y, axis=1, keepdims=True)
    d = y - mu
    var = jnp.mean(d * d, axis=1, keepdims=True)
    n = d / jnp.sqrt(var + EPS)
    n = n * params["ln_w"][None, :, None, None] + params["ln_b"][None, :, None, None]
    h = jnp.einsum("oc,nchw->nohw", params["w4"], n, precision="highest") \
        + params["b4"][None, :, None, None]
    half = h.shape[1] // 2
    g = h[:, :half] * h[:, half:]
    x = jnp.einsum("oi,nihw->nohw", params["w5"], g, precision="highest") \
        + params["b5"][None, :, None, None]
    out = y + x * params["gamma"][None, :, None, None]
    return out.astype(y_nchw.dtype)


if __name__ == "__main__":
    key = jax.random.PRNGKey(0)

    # (N, dim, ffn_expansion, H, W): the small spec-like config plus a larger-C
    # config whose HW (=400) exercises the ragged-last-block (pad-free) path.
    configs = [(2, 4, 2, 16, 16), (1, 64, 2, 20, 20)]

    for (N, dim, ffn_exp, H, W) in configs:
        k_in, k_p, key = jax.random.split(key, 3)
        y = jax.random.normal(k_in, (N, dim, H, W), jnp.float32)
        params = init_params(k_p, dim, ffn_exp)

        out = jax.block_until_ready(
            naf_feedforward_pallas(y, params, compute_dtype=jnp.float32))
        ref = naf_feedforward_ref(y, params)
        assert out.shape == y.shape and out.dtype == y.dtype
        err = float(jnp.max(jnp.abs(out - ref)))
        assert err < 3e-3, f"f32 path max error {err}"

    # Generation-default path (bf16 matmul operands on v6e/v7x) -- looser tol.
    N, dim, ffn_exp, H, W = configs[-1]
    k_in, k_p, key = jax.random.split(key, 3)
    y = jax.random.normal(k_in, (N, dim, H, W), jnp.float32)
    params = init_params(k_p, dim, ffn_exp)
    out_auto = jax.block_until_ready(naf_feedforward_pallas(y, params))
    ref = naf_feedforward_ref(y, params)
    err_auto = float(jnp.max(jnp.abs(out_auto - ref)))
    assert err_auto < 5e-2, f"auto path max error {err_auto}"

    print("KERNEL_OK")
</pallas_src>

<mosaic_0001>
module attributes {stable_mosaic.version = 11 : i64} {
  func.func @_naf_ffn_kernel(%arg0: i32, %arg1: i32, %arg2: memref<1x4x128xf32, #tpu.memory_space<vmem>>, %arg3: memref<4x4xf32, #tpu.memory_space<vmem>>, %arg4: memref<4x1xf32, #tpu.memory_space<vmem>>, %arg5: memref<4x4xf32, #tpu.memory_space<vmem>>, %arg6: memref<4x1xf32, #tpu.memory_space<vmem>>, %arg7: memref<4x4xf32, #tpu.memory_space<vmem>>, %arg8: memref<4x1xf32, #tpu.memory_space<vmem>>, %arg9: memref<1x4x128xf32, #tpu.memory_space<vmem>>) attributes {dimension_semantics = [#tpu.dimension_semantics<parallel>, #tpu.dimension_semantics<parallel>], iteration_bounds = array<i64: 2, 2>, scalar_prefetch = 0 : i64, scratch_operands = 0 : i64, tpu.core_type = #tpu.core_type<tc>, window_params = [{transform_indices = @transform_0, window_bounds = array<i64: 1, 4, 128>}, {pipeline_mode = #tpu.pipeline_mode<synchronous>, transform_indices = @transform_1, window_bounds = array<i64: 4, 4>}, {pipeline_mode = #tpu.pipeline_mode<synchronous>, transform_indices = @transform_2, window_bounds = array<i64: 4, 1>}, {pipeline_mode = #tpu.pipeline_mode<synchronous>, transform_indices = @transform_3, window_bounds = array<i64: 4, 4>}, {pipeline_mode = #tpu.pipeline_mode<synchronous>, transform_indices = @transform_4, window_bounds = array<i64: 4, 1>}, {pipeline_mode = #tpu.pipeline_mode<synchronous>, transform_indices = @transform_5, window_bounds = array<i64: 4, 4>}, {pipeline_mode = #tpu.pipeline_mode<synchronous>, transform_indices = @transform_6, window_bounds = array<i64: 4, 1>}, {transform_indices = @transform_7, window_bounds = array<i64: 1, 4, 128>}]} {
    %c0 = arith.constant 0 : index
    %c0_0 = arith.constant 0 : index
    %c0_1 = arith.constant 0 : index
    %0 = vector.load %arg2[%c0, %c0_0, %c0_1] : memref<1x4x128xf32, #tpu.memory_space<vmem>>, vector<1x4x128xf32>
    %1 = vector.shape_cast %0 : vector<1x4x128xf32> to vector<4x128xf32>
    %cst = arith.constant dense<0.000000e+00> : vector<128xf32>
    %2 = vector.multi_reduction <add>, %1, %cst [0] : vector<4x128xf32> to vector<128xf32>
    %3 = vector.shape_cast %2 : vector<128xf32> to vector<1x128xf32>
    %cst_2 = arith.constant 4.000000e+00 : f32
    %4 = vector.broadcast %cst_2 : f32 to vector<1x128xf32>
    %5 = arith.divf %3, %4 : vector<1x128xf32>
    %6 = arith.mulf %1, %1 : vector<4x128xf32>
    %cst_3 = arith.constant dense<0.000000e+00> : vector<128xf32>
    %7 = vector.multi_reduction <add>, %6, %cst_3 [0] : vector<4x128xf32> to vector<128xf32>
    %8 = vector.shape_cast %7 : vector<128xf32> to vector<1x128xf32>
    %cst_4 = arith.constant 4.000000e+00 : f32
    %9 = vector.broadcast %cst_4 : f32 to vector<1x128xf32>
    %10 = arith.divf %8, %9 : vector<1x128xf32>
    %11 = arith.mulf %5, %5 : vector<1x128xf32>
    %12 = arith.subf %10, %11 : vector<1x128xf32>
    %cst_5 = arith.constant 0.000000e+00 : f32
    %13 = vector.broadcast %cst_5 : f32 to vector<1x128xf32>
    %14 = arith.maximumf %12, %13 : vector<1x128xf32>
    %15 = vector.broadcast %5 : vector<1x128xf32> to vector<4x128xf32>
    %16 = arith.subf %1, %15 : vector<4x128xf32>
    %cst_6 = arith.constant 9.99999997E-7 : f32
    %17 = vector.broadcast %cst_6 : f32 to vector<1x128xf32>
    %18 = arith.addf %14, %17 : vector<1x128xf32>
    %19 = math.rsqrt %18 : vector<1x128xf32>
    %20 = vector.broadcast %19 : vector<1x128xf32> to vector<4x128xf32>
    %21 = arith.mulf %16, %20 : vector<4x128xf32>
    %c0_7 = arith.constant 0 : index
    %c0_8 = arith.constant 0 : index
    %22 = vector.load %arg3[%c0_7, %c0_8] : memref<4x4xf32, #tpu.memory_space<vmem>>, vector<4x4xf32>
    %cst_9 = arith.constant dense<0.000000e+00> : vector<4x128xf32>
    %23 = tpu.matmul %22, %21, %cst_9 {dimension_numbers = #tpu.dot_dimension_numbers<[1], [0], [0], [1], [0, 0, 1, 1], [], []>, precision = #tpu.contract_precision<fp32>} : vector<4x4xf32>, vector<4x128xf32>, vector<4x128xf32> -> vector<4x128xf32>
    %c0_10 = arith.constant 0 : index
    %c0_11 = arith.constant 0 : index
    %24 = vector.load %arg4[%c0_10, %c0_11] : memref<4x1xf32, #tpu.memory_space<vmem>>, vector<4x1xf32>
    %25 = vector.broadcast %24 : vector<4x1xf32> to vector<4x128xf32>
    %26 = arith.addf %23, %25 : vector<4x128xf32>
    %c0_12 = arith.constant 0 : index
    %c0_13 = arith.constant 0 : index
    %27 = vector.load %arg5[%c0_12, %c0_13] : memref<4x4xf32, #tpu.memory_space<vmem>>, vector<4x4xf32>
    %cst_14 = arith.constant dense<0.000000e+00> : vector<4x128xf32>
    %28 = tpu.matmul %27, %21, %cst_14 {dimension_numbers = #tpu.dot_dimension_numbers<[1], [0], [0], [1], [0, 0, 1, 1], [], []>, precision = #tpu.contract_precision<fp32>} : vector<4x4xf32>, vector<4x128xf32>, vector<4x128xf32> -> vector<4x128xf32>
    %c0_15 = arith.constant 0 : index
    %c0_16 = arith.constant 0 : index
    %29 = vector.load %arg6[%c0_15, %c0_16] : memref<4x1xf32, #tpu.memory_space<vmem>>, vector<4x1xf32>
    %30 = vector.broadcast %29 : vector<4x1xf32> to vector<4x128xf32>
    %31 = arith.addf %28, %30 : vector<4x128xf32>
    %32 = arith.mulf %26, %31 : vector<4x128xf32>
    %c0_17 = arith.constant 0 : index
    %c0_18 = arith.constant 0 : index
    %33 = vector.load %arg7[%c0_17, %c0_18] : memref<4x4xf32, #tpu.memory_space<vmem>>, vector<4x4xf32>
    %cst_19 = arith.constant dense<0.000000e+00> : vector<4x128xf32>
    %34 = tpu.matmul %33, %32, %cst_19 {dimension_numbers = #tpu.dot_dimension_numbers<[1], [0], [0], [1], [0, 0, 1, 1], [], []>, precision = #tpu.contract_precision<fp32>} : vector<4x4xf32>, vector<4x128xf32>, vector<4x128xf32> -> vector<4x128xf32>
    %c0_20 = arith.constant 0 : index
    %c0_21 = arith.constant 0 : index
    %35 = vector.load %arg8[%c0_20, %c0_21] : memref<4x1xf32, #tpu.memory_space<vmem>>, vector<4x1xf32>
    %36 = vector.broadcast %35 : vector<4x1xf32> to vector<4x128xf32>
    %37 = arith.addf %34, %36 : vector<4x128xf32>
    %c0_22 = arith.constant 0 : index
    %c0_23 = arith.constant 0 : index
    %c0_24 = arith.constant 0 : index
    %38 = vector.load %arg2[%c0_22, %c0_23, %c0_24] : memref<1x4x128xf32, #tpu.memory_space<vmem>>, vector<1x4x128xf32>
    %39 = vector.shape_cast %38 : vector<1x4x128xf32> to vector<4x128xf32>
    %40 = arith.addf %39, %37 : vector<4x128xf32>
    %c0_25 = arith.constant 0 : index
    %c0_26 = arith.constant 0 : index
    %c0_27 = arith.constant 0 : index
    %41 = vector.load %arg9[%c0_25, %c0_26, %c0_27] : memref<1x4x128xf32, #tpu.memory_space<vmem>>, vector<1x4x128xf32>
    %42 = vector.shape_cast %41 : vector<1x4x128xf32> to vector<4x128xf32>
    %43 = vector.shape_cast %40 : vector<4x128xf32> to vector<1x4x128xf32>
    tpu.vector_store %arg9[%c0_25, %c0_26, %c0_27], %43 {strides = array<i32>} : memref<1x4x128xf32, #tpu.memory_space<vmem>>, vector<1x4x128xf32>,
    return
  }
  func.func @transform_0(%arg0: i32, %arg1: i32) -> (i32, i32, i32) {
    %c0_i32 = arith.constant 0 : i32
    %c0_i32_0 = arith.constant 0 : i32
    return %arg0, %c0_i32, %arg1 : i32, i32, i32
  }
  func.func @transform_1(%arg0: i32, %arg1: i32) -> (i32, i32) {
    %c0_i32 = arith.constant 0 : i32
    %c0_i32_0 = arith.constant 0 : i32
    %c0_i32_1 = arith.constant 0 : i32
    return %c0_i32, %c0_i32_0 : i32, i32
  }
  func.func @transform_2(%arg0: i32, %arg1: i32) -> (i32, i32) {
    %c0_i32 = arith.constant 0 : i32
    %c0_i32_0 = arith.constant 0 : i32
    %c0_i32_1 = arith.constant 0 : i32
    return %c0_i32, %c0_i32_0 : i32, i32
  }
  func.func @transform_3(%arg0: i32, %arg1: i32) -> (i32, i32) {
    %c0_i32 = arith.constant 0 : i32
    %c0_i32_0 = arith.constant 0 : i32
    %c0_i32_1 = arith.constant 0 : i32
    return %c0_i32, %c0_i32_0 : i32, i32
  }
  func.func @transform_4(%arg0: i32, %arg1: i32) -> (i32, i32) {
    %c0_i32 = arith.constant 0 : i32
    %c0_i32_0 = arith.constant 0 : i32
    %c0_i32_1 = arith.constant 0 : i32
    return %c0_i32, %c0_i32_0 : i32, i32
  }
  func.func @transform_5(%arg0: i32, %arg1: i32) -> (i32, i32) {
    %c0_i32 = arith.constant 0 : i32
    %c0_i32_0 = arith.constant 0 : i32
    %c0_i32_1 = arith.constant 0 : i32
    return %c0_i32, %c0_i32_0 : i32, i32
  }
  func.func @transform_6(%arg0: i32, %arg1: i32) -> (i32, i32) {
    %c0_i32 = arith.constant 0 : i32
    %c0_i32_0 = arith.constant 0 : i32
    %c0_i32_1 = arith.constant 0 : i32
    return %c0_i32, %c0_i32_0 : i32, i32
  }
  func.func @transform_7(%arg0: i32, %arg1: i32) -> (i32, i32, i32) {
    %c0_i32 = arith.constant 0 : i32
    %c0_i32_0 = arith.constant 0 : i32
    return %arg0, %c0_i32, %arg1 : i32, i32, i32
  }
}

</mosaic_0001>

<llo_original>
// kernel: tpu_custom_call.1
$region0: #{tpu_custom_call.1}
  #allocation0 [shape = 'u32[]', space=smem, size = 0x4, offset = 0x4, fixed_abs, tag = 'smem constant byte address 0x4 - core index']
  #allocation1 [shape = 'u32[144,128]{1,0:T(1,128)}', space=vmem, size = 0x12000, scoped, tag = 'internal scratch']
  %s0 = inlined_call_operand.hbm [shape: f32[2,4,256], index: 0, kind: input, shape index: {}]
  %s1 = inlined_call_operand.hbm [shape: f32[4,4], index: 1, kind: input, shape index: {}]
  %s2 = inlined_call_operand.hbm [shape: f32[4,1], index: 2, kind: input, shape index: {}]
  %s3 = inlined_call_operand.hbm [shape: f32[4,4], index: 3, kind: input, shape index: {}]
  %s4 = inlined_call_operand.hbm [shape: f32[4,1], index: 4, kind: input, shape index: {}]
  %s5 = inlined_call_operand.hbm [shape: f32[4,4], index: 5, kind: input, shape index: {}]
  %s6 = inlined_call_operand.hbm [shape: f32[4,1], index: 6, kind: input, shape index: {}]
  %s7 = inlined_call_operand.hbm [shape: f32[2,4,256], index: 7, kind: output, shape index: {}]
  %s8 = sld [smem:[#allocation0]]
  $region89: #{tpu_custom_call.1} parent=0
    _
  %s10 = ssub.s32 1, %s8
  %s11 = scalar_select 0, %s10, %s8
  $region1: #{tpu_custom_call.1} parent=0
    #allocation2 [shape = 'u8[4096]{0}', space=vmem, size = 0x1000, scoped, tag = 'input window, operand 0']
    #allocation3 [shape = 's32[2]{0}', space=sflag, size = 0x8, scoped, tag = 'scoped memory for tpu_custom_call.1']
    #allocation4 [shape = 's32[2]{0}', space=sflag, size = 0x8, scoped, tag = 'scoped memory for tpu_custom_call.1']
    #allocation5 [shape = 'u8[2048]{0}', space=vmem, size = 0x800, scoped, tag = 'input window, operand 1, single buffered']
    #allocation6 [shape = 's32[1]{0}', space=sflag, size = 0x4, scoped, tag = 'scoped memory for tpu_custom_call.1']
    #allocation7 [shape = 'u8[2048]{0}', space=vmem, size = 0x800, scoped, tag = 'input window, operand 2, single buffered']
    #allocation8 [shape = 'u8[2048]{0}', space=vmem, size = 0x800, scoped, tag = 'input window, operand 3, single buffered']
    #allocation9 [shape = 's32[1]{0}', space=sflag, size = 0x4, scoped, tag = 'scoped memory for tpu_custom_call.1']
    #allocation10 [shape = 'u8[2048]{0}', space=vmem, size = 0x800, scoped, tag = 'input window, operand 4, single buffered']
    #allocation11 [shape = 'u8[2048]{0}', space=vmem, size = 0x800, scoped, tag = 'input window, operand 5, single buffered']
    #allocation12 [shape = 's32[1]{0}', space=sflag, size = 0x4, scoped, tag = 'scoped memory for tpu_custom_call.1']
    #allocation13 [shape = 'u8[2048]{0}', space=vmem, size = 0x800, scoped, tag = 'input window, operand 6, single buffered']
    #allocation14 [shape = 'u8[4096]{0}', space=vmem, size = 0x1000, scoped, tag = 'output window, operand 0']
    %12 = vsyncpa [#allocation3], 0
    %s13 = scalar_lea.sflag [#allocation3], 1
    %14 = vsyncpa %s13, 0
    %15 = vsyncpa [#allocation6], 0
    %16 = vsyncpa [#allocation9], 0
    %17 = vsyncpa [#allocation12], 0
    %18 = vsyncpa [#allocation4], 0
    %s19 = scalar_lea.sflag [#allocation4], 1
    %20 = vsyncpa %s19, 0
    loop: start=0, step=1, limit=6
    $region2: #{tpu_custom_call.1} parent=1 // loop_pre_header
      _
    $region3: #{tpu_custom_call.1} parent=1 // loop_header
      %s22 = sphi 0, %s26
      %p23 = scmp.ge.s32.totalorder %s22, 6
      %s29 = sphi 0, %s41
      %s30 = sphi 0, %s37
      %s31 = sphi 0, %s29
      %s32 = sphi 0, %s30
      %s33 = sphi 0, %s31
      %s34 = sphi 0, %s32
      %s46 = sphi 0, %s48
      %s49 = sphi 0, %s46
      %s50 = sphi 0, %s49
      %s66 = sphi 0, %s50
      %s70 = sphi 0, %s70
      %s72 = sphi 0, %s70
      %s73 = sphi 0, %s72
      %s87 = sphi 0, %s73
      %s91 = sphi 0, %s91
      %s93 = sphi 0, %s91
      %s94 = sphi 0, %s93
      %s108 = sphi 0, %s94
      %s112 = sphi 0, %s112
      %s114 = sphi 0, %s112
      %s115 = sphi 0, %s114
      %s129 = sphi 0, %s115
      %s133 = sphi 0, %s133
      %s135 = sphi 0, %s133
      %s136 = sphi 0, %s135
      %s150 = sphi 0, %s136
      %s154 = sphi 0, %s154
      %s156 = sphi 0, %s154
      %s157 = sphi 0, %s156
      %s171 = sphi 0, %s157
      %s175 = sphi 0, %s175
      %s177 = sphi 0, %s175
      %s178 = sphi 0, %s177
      %s192 = sphi 0, %s178
      %s200 = sphi 0, %s202
      %s203 = sphi 0, %s200
      %s204 = sphi 0, %s203
      %s220 = sphi 0, %s204
    $region4: #{tpu_custom_call.1} parent=1 // loop_header_branch
      %25 = sbr.rel (%p23) target = $region8
    $region5: #{tpu_custom_call.1} parent=1 // loop_body
      %s27 = ssub.s32 %s22, 1
      %s28 = ssub.s32 %s22, 2
      %s35 = sadd.s32 1, %s30
      %p36 = scmp.ge.s32.totalorder %s35, 2
      %s37 = scalar_select %p36, 0, %s35
      %s38 = sadd.s32 1, %s29
      %s39 = scalar_select %p36, %s38, %s29
      %p40 = scmp.ge.s32.totalorder %s39, 2
      %s41 = scalar_select %p40, 0, %s39
      %s42 = ssub.s32 %s29, %s41
      %s43 = ssub.s32 %s30, %s37
      %s44 = sor.u32 %s42, %s43
      %p45 = scmp.eq.s32.totalorder %s44, 0
      %s47 = sadd.s32 %s46, 1
      %s48 = scalar_select %p45, %s46, %s47
      %p51 = pneg %p45
      %p52 = scmp.eq.s32.totalorder %s22, 3
      %p53 = por %p51, %p52
      %p54 = scmp.ne.s32.totalorder %s46, %s49
      %p55 = scmp.eq.s32.totalorder %s22, 0
      %p56 = por %p54, %p55
      %p57 = scmp.ne.s32.totalorder %s46, %s49
      %p58 = scmp.eq.s32.totalorder %s27, 3
      %p59 = por %p57, %p58
      %p60 = scmp.ne.s32.totalorder %s49, %s50
      %p61 = scmp.eq.s32.totalorder %s27, 0
      %p62 = por %p60, %p61
      %p63 = scmp.ne.s32.totalorder %s49, %s50
      %p64 = scmp.eq.s32.totalorder %s28, 3
      %p65 = por %p63, %p64
      %p67 = scmp.ne.s32.totalorder %s50, %s66
      %p68 = scmp.eq.s32.totalorder %s28, 0
      %p69 = por %p67, %p68
      %s71 = sadd.s32 %s70, 1
      %p74 = scmp.eq.s32.totalorder %s22, 3
      %p75 = scmp.ne.s32.totalorder %s70, %s72
      %p76 = scmp.eq.s32.totalorder %s22, 0
      %p77 = por %p75, %p76
      %p78 = scmp.ne.s32.totalorder %s70, %s72
      %p79 = scmp.eq.s32.totalorder %s27, 3
      %p80 = por %p78, %p79
      %p81 = scmp.ne.s32.totalorder %s72, %s73
      %p82 = scmp.eq.s32.totalorder %s27, 0
      %p83 = por %p81, %p82
      %p84 = scmp.ne.s32.totalorder %s72, %s73
      %p85 = scmp.eq.s32.totalorder %s28, 3
      %p86 = por %p84, %p85
      %p88 = scmp.ne.s32.totalorder %s73, %s87
      %p89 = scmp.eq.s32.totalorder %s28, 0
      %p90 = por %p88, %p89
      %s92 = sadd.s32 %s91, 1
      %p95 = scmp.eq.s32.totalorder %s22, 3
      %p96 = scmp.ne.s32.totalorder %s91, %s93
      %p97 = scmp.eq.s32.totalorder %s22, 0
      %p98 = por %p96, %p97
      %p99 = scmp.ne.s32.totalorder %s91, %s93
      %p100 = scmp.eq.s32.totalorder %s27, 3
      %p101 = por %p99, %p100
      %p102 = scmp.ne.s32.totalorder %s93, %s94
      %p103 = scmp.eq.s32.totalorder %s27, 0
      %p104 = por %p102, %p103
      %p105 = scmp.ne.s32.totalorder %s93, %s94
      %p106 = scmp.eq.s32.totalorder %s28, 3
      %p107 = por %p105, %p106
      %p109 = scmp.ne.s32.totalorder %s94, %s108
      %p110 = scmp.eq.s32.totalorder %s28, 0
      %p111 = por %p109, %p110
      %s113 = sadd.s32 %s112, 1
      %p116 = scmp.eq.s32.totalorder %s22, 3
      %p117 = scmp.ne.s32.totalorder %s112, %s114
      %p118 = scmp.eq.s32.totalorder %s22, 0
      %p119 = por %p117, %p118
      %p120 = scmp.ne.s32.totalorder %s112, %s114
      %p121 = scmp.eq.s32.totalorder %s27, 3
      %p122 = por %p120, %p121
      %p123 = scmp.ne.s32.totalorder %s114, %s115
      %p124 = scmp.eq.s32.totalorder %s27, 0
      %p125 = por %p123, %p124
      %p126 = scmp.ne.s32.totalorder %s114, %s115
      %p127 = scmp.eq.s32.totalorder %s28, 3
      %p128 = por %p126, %p127
      %p130 = scmp.ne.s32.totalorder %s115, %s129
      %p131 = scmp.eq.s32.totalorder %s28, 0
      %p132 = por %p130, %p131
      %s134 = sadd.s32 %s133, 1
      %p137 = scmp.eq.s32.totalorder %s22, 3
      %p138 = scmp.ne.s32.totalorder %s133, %s135
      %p139 = scmp.eq.s32.totalorder %s22, 0
      %p140 = por %p138, %p139
      %p141 = scmp.ne.s32.totalorder %s133, %s135
      %p142 = scmp.eq.s32.totalorder %s27, 3
      %p143 = por %p141, %p142
      %p144 = scmp.ne.s32.totalorder %s135, %s136
      %p145 = scmp.eq.s32.totalorder %s27, 0
      %p146 = por %p144, %p145
      %p147 = scmp.ne.s32.totalorder %s135, %s136
      %p148 = scmp.eq.s32.totalorder %s28, 3
      %p149 = por %p147, %p148
      %p151 = scmp.ne.s32.totalorder %s136, %s150
      %p152 = scmp.eq.s32.totalorder %s28, 0
      %p153 = por %p151, %p152
      %s155 = sadd.s32 %s154, 1
      %p158 = scmp.eq.s32.totalorder %s22, 3
      %p159 = scmp.ne.s32.totalorder %s154, %s156
      %p160 = scmp.eq.s32.totalorder %s22, 0
      %p161 = por %p159, %p160
      %p162 = scmp.ne.s32.totalorder %s154, %s156
      %p163 = scmp.eq.s32.totalorder %s27, 3
      %p164 = por %p162, %p163
      %p165 = scmp.ne.s32.totalorder %s156, %s157
      %p166 = scmp.eq.s32.totalorder %s27, 0
      %p167 = por %p165, %p166
      %p168 = scmp.ne.s32.totalorder %s156, %s157
      %p169 = scmp.eq.s32.totalorder %s28, 3
      %p170 = por %p168, %p169
      %p172 = scmp.ne.s32.totalorder %s157, %s171
      %p173 = scmp.eq.s32.totalorder %s28, 0
      %p174 = por %p172, %p173
      %s176 = sadd.s32 %s175, 1
      %p179 = scmp.eq.s32.totalorder %s22, 3
      %p180 = scmp.ne.s32.totalorder %s175, %s177
      %p181 = scmp.eq.s32.totalorder %s22, 0
      %p182 = por %p180, %p181
      %p183 = scmp.ne.s32.totalorder %s175, %s177
      %p184 = scmp.eq.s32.totalorder %s27, 3
      %p185 = por %p183, %p184
      %p186 = scmp.ne.s32.totalorder %s177, %s178
      %p187 = scmp.eq.s32.totalorder %s27, 0
      %p188 = por %p186, %p187
      %p189 = scmp.ne.s32.totalorder %s177, %s178
      %p190 = scmp.eq.s32.totalorder %s28, 3
      %p191 = por %p189, %p190
      %p193 = scmp.ne.s32.totalorder %s178, %s192
      %p194 = scmp.eq.s32.totalorder %s28, 0
      %p195 = por %p193, %p194
      %s196 = ssub.s32 %s29, %s41
      %s197 = ssub.s32 %s30, %s37
      %s198 = sor.u32 %s196, %s197
      %p199 = scmp.eq.s32.totalorder %s198, 0
      %s201 = sadd.s32 %s200, 1
      %s202 = scalar_select %p199, %s200, %s201
      %p205 = pneg %p199
      %p206 = scmp.eq.s32.totalorder %s22, 3
      %p207 = por %p205, %p206
      %p208 = scmp.ne.s32.totalorder %s200, %s203
      %p209 = scmp.eq.s32.totalorder %s22, 0
      %p210 = por %p208, %p209
      %p211 = scmp.ne.s32.totalorder %s200, %s203
      %p212 = scmp.eq.s32.totalorder %s27, 3
      %p213 = por %p211, %p212
      %p214 = scmp.ne.s32.totalorder %s203, %s204
      %p215 = scmp.eq.s32.totalorder %s27, 0
      %p216 = por %p214, %p215
      %p217 = scmp.ne.s32.totalorder %s203, %s204
      %p218 = scmp.eq.s32.totalorder %s28, 3
      %p219 = por %p217, %p218
      %p221 = scmp.ne.s32.totalorder %s204, %s220
      %p222 = scmp.eq.s32.totalorder %s28, 0
      %p223 = por %p221, %p222
      %p224 = scmp.le.s32.totalorder 1, %s22
      %p225 = scmp.lt.s32.totalorder %s22, 5
      %p226 = pnand %p224, %p225
      %p227 = pneg %p226
      // Predicated region
      $region9: #{tpu_custom_call.1} parent=5 // pred_check
        _
      $region10: #{tpu_custom_call.1} parent=5 // pred_check_branch
        %229 = sbr.rel (%p226) target = $region12
      $region11: #{tpu_custom_call.1} parent=5 // pred_region
        %s230 = ssub.s32 %s22, 1
        // Predicated region
        $region13: #{tpu_custom_call.1} parent=11 // pred_check
          %p231 = pneg %p83
        $region14: #{tpu_custom_call.1} parent=11 // pred_check_branch
          %233 = sbr.rel (%p231) target = $region16
        $region15: #{tpu_custom_call.1} parent=11 // pred_region
          %s235 = ssub.s32 64, 64
          %236 = vsyncadd [#allocation6], %s235
          %s238 = sshll.u32 [#allocation5], 4
          %s239 = int_to_ptr.vmem [resolvable:$true] %s238
          %241 = dma.hbm_to_vmem [thread:$0]  %s1, 64, %s239, [#allocation6]
        $region16: #{tpu_custom_call.1} parent=11 // pred_fallthru
          _
        // Predicated region
        $region17: #{tpu_custom_call.1} parent=11 // pred_check
          %p242 = pneg %p104
        $region18: #{tpu_custom_call.1} parent=11 // pred_check_branch
          %244 = sbr.rel (%p242) target = $region20
        $region19: #{tpu_custom_call.1} parent=11 // pred_region
          %s246 = ssub.s32 64, 64
          %247 = vsyncadd [#allocation6], %s246
          %s249 = sshll.u32 [#allocation7], 4
          %s250 = int_to_ptr.vmem [resolvable:$true] %s249
          %252 = dma.hbm_to_vmem [thread:$0]  %s2, 64, %s250, [#allocation6]
        $region20: #{tpu_custom_call.1} parent=11 // pred_fallthru
          _
        // Predicated region
        $region21: #{tpu_custom_call.1} parent=11 // pred_check
          %p253 = pneg %p125
        $region22: #{tpu_custom_call.1} parent=11 // pred_check_branch
          %255 = sbr.rel (%p253) target = $region24
        $region23: #{tpu_custom_call.1} parent=11 // pred_region
          %s257 = ssub.s32 64, 64
          %258 = vsyncadd [#allocation9], %s257
          %s260 = sshll.u32 [#allocation8], 4
          %s261 = int_to_ptr.vmem [resolvable:$true] %s260
          %263 = dma.hbm_to_vmem [thread:$0]  %s3, 64, %s261, [#allocation9]
        $region24: #{tpu_custom_call.1} parent=11 // pred_fallthru
          _
        // Predicated region
        $region25: #{tpu_custom_call.1} parent=11 // pred_check
          %p264 = pneg %p146
        $region26: #{tpu_custom_call.1} parent=11 // pred_check_branch
          %266 = sbr.rel (%p264) target = $region28
        $region27: #{tpu_custom_call.1} parent=11 // pred_region
          %s268 = ssub.s32 64, 64
          %269 = vsyncadd [#allocation9], %s268
          %s271 = sshll.u32 [#allocation10], 4
          %s272 = int_to_ptr.vmem [resolvable:$true] %s271
          %274 = dma.hbm_to_vmem [thread:$0]  %s4, 64, %s272, [#allocation9]
        $region28: #{tpu_custom_call.1} parent=11 // pred_fallthru
          _
        // Predicated region
        $region29: #{tpu_custom_call.1} parent=11 // pred_check
          %p275 = pneg %p167
        $region30: #{tpu_custom_call.1} parent=11 // pred_check_branch
          %277 = sbr.rel (%p275) target = $region32
        $region31: #{tpu_custom_call.1} parent=11 // pred_region
          %s279 = ssub.s32 64, 64
          %280 = vsyncadd [#allocation12], %s279
          %s282 = sshll.u32 [#allocation11], 4
          %s283 = int_to_ptr.vmem [resolvable:$true] %s282
          %285 = dma.hbm_to_vmem [thread:$0]  %s5, 64, %s283, [#allocation12]
        $region32: #{tpu_custom_call.1} parent=11 // pred_fallthru
          _
        // Predicated region
        $region33: #{tpu_custom_call.1} parent=11 // pred_check
          %p286 = pneg %p188
        $region34: #{tpu_custom_call.1} parent=11 // pred_check_branch
          %288 = sbr.rel (%p286) target = $region36
        $region35: #{tpu_custom_call.1} parent=11 // pred_region
          %s290 = ssub.s32 64, 64
          %291 = vsyncadd [#allocation12], %s290
          %s293 = sshll.u32 [#allocation13], 4
          %s294 = int_to_ptr.vmem [resolvable:$true] %s293
          %296 = dma.hbm_to_vmem [thread:$0]  %s6, 64, %s294, [#allocation12]
        $region36: #{tpu_custom_call.1} parent=11 // pred_fallthru
          _
      $region12: #{tpu_custom_call.1} parent=5 // pred_fallthru
        _
      %p297 = scmp.lt.s32.totalorder %s22, 4
      // Predicated region
      $region37: #{tpu_custom_call.1} parent=5 // pred_check
        %p298 = pneg %p297
      $region38: #{tpu_custom_call.1} parent=5 // pred_check_branch
        %300 = sbr.rel (%p298) target = $region40
      $region39: #{tpu_custom_call.1} parent=5 // pred_region
        // Predicated region
        $region41: #{tpu_custom_call.1} parent=39 // pred_check
          %p301 = pneg %p56
        $region42: #{tpu_custom_call.1} parent=39 // pred_check_branch
          %303 = sbr.rel (%p301) target = $region44
        $region43: #{tpu_custom_call.1} parent=39 // pred_region
          %s304 = sand.u32 %s46, 1
          %s305 = scalar_lea.sflag [#allocation3], %s304
          %s306 = sand.u32 %s46, 1
          %s307 = smul.addr %s306, 4
          %s308 = scalar_lea.vmem [#allocation2], %s307
          %s310 = ssub.s32 64, 64
          %311 = vsyncadd %s305, %s310
          %s312 = smul.addr %s29, 2
          %s313 = sadd.s32 %s30, %s312
          %s314 = smul.addr %s313, 64
          %s315 = scalar_lea.hbm %s0, %s314
          %s317 = sshll.u32 %s308, 4
          %s318 = int_to_ptr.vmem [resolvable:$true] %s317
          %320 = dma.hbm_to_vmem [thread:$0]  %s315, 64, %s318, %s305
        $region44: #{tpu_custom_call.1} parent=39 // pred_fallthru
          _
      $region40: #{tpu_custom_call.1} parent=5 // pred_fallthru
        _
      %p321 = scmp.le.s32.totalorder 1, %s22
      %p322 = scmp.lt.s32.totalorder %s22, 5
      %p323 = pnand %p321, %p322
      %p324 = pneg %p323
      // Predicated region
      $region45: #{tpu_custom_call.1} parent=5 // pred_check
        _
      $region46: #{tpu_custom_call.1} parent=5 // pred_check_branch
        %326 = sbr.rel (%p323) target = $region48
      $region47: #{tpu_custom_call.1} parent=5 // pred_region
        %s327 = ssub.s32 %s22, 1
        %s328 = sand.u32 %s49, 1
        %s329 = scalar_lea.sflag [#allocation3], %s328
        %s330 = sand.u32 %s49, 1
        %s331 = smul.addr %s330, 4
        %s332 = scalar_lea.vmem [#allocation2], %s331
        // Predicated region
        $region49: #{tpu_custom_call.1} parent=47 // pred_check
          %p333 = pneg %p62
        $region50: #{tpu_custom_call.1} parent=47 // pred_check_branch
          %335 = sbr.rel (%p333) target = $region52
        $region51: #{tpu_custom_call.1} parent=47 // pred_region
          %336 = dma.done %s329, 64
        $region52: #{tpu_custom_call.1} parent=47 // pred_fallthru
          _
        // Predicated region
        $region53: #{tpu_custom_call.1} parent=47 // pred_check
          %p337 = pneg %p83
        $region54: #{tpu_custom_call.1} parent=47 // pred_check_branch
          %339 = sbr.rel (%p337) target = $region56
        $region55: #{tpu_custom_call.1} parent=47 // pred_region
          %340 = dma.done [#allocation6], 64
        $region56: #{tpu_custom_call.1} parent=47 // pred_fallthru
          _
        // Predicated region
        $region57: #{tpu_custom_call.1} parent=47 // pred_check
          %p341 = pneg %p104
        $region58: #{tpu_custom_call.1} parent=47 // pred_check_branch
          %343 = sbr.rel (%p341) target = $region60
        $region59: #{tpu_custom_call.1} parent=47 // pred_region
          %344 = dma.done [#allocation6], 64
        $region60: #{tpu_custom_call.1} parent=47 // pred_fallthru
          _
        // Predicated region
        $region61: #{tpu_custom_call.1} parent=47 // pred_check
          %p345 = pneg %p125
        $region62: #{tpu_custom_call.1} parent=47 // pred_check_branch
          %347 = sbr.rel (%p345) target = $region64
        $region63: #{tpu_custom_call.1} parent=47 // pred_region
          %348 = dma.done [#allocation9], 64
        $region64: #{tpu_custom_call.1} parent=47 // pred_fallthru
          _
        // Predicated region
        $region65: #{tpu_custom_call.1} parent=47 // pred_check
          %p349 = pneg %p146
        $region66: #{tpu_custom_call.1} parent=47 // pred_check_branch
          %351 = sbr.rel (%p349) target = $region68
        $region67: #{tpu_custom_call.1} parent=47 // pred_region
          %352 = dma.done [#allocation9], 64
        $region68: #{tpu_custom_call.1} parent=47 // pred_fallthru
          _
        // Predicated region
        $region69: #{tpu_custom_call.1} parent=47 // pred_check
          %p353 = pneg %p167
        $region70: #{tpu_custom_call.1} parent=47 // pred_check_branch
          %355 = sbr.rel (%p353) target = $region72
        $region71: #{tpu_custom_call.1} parent=47 // pred_region
          %356 = dma.done [#allocation12], 64
        $region72: #{tpu_custom_call.1} parent=47 // pred_fallthru
          _
        // Predicated region
        $region73: #{tpu_custom_call.1} parent=47 // pred_check
          %p357 = pneg %p188
        $region74: #{tpu_custom_call.1} parent=47 // pred_check_branch
          %359 = sbr.rel (%p357) target = $region76
        $region75: #{tpu_custom_call.1} parent=47 // pred_region
          %360 = dma.done [#allocation12], 64
        $region76: #{tpu_custom_call.1} parent=47 // pred_fallthru
          _
        %s361 = sand.u32 %s49, 1
        %s362 = scalar_lea.sflag [#allocation3], %s361
        %s363 = sand.u32 %s49, 1
        %s364 = smul.addr %s363, 4
        %s365 = scalar_lea.vmem [#allocation2], %s364
        %p366 = pneg %p62
        %p367 = pneg %p59
        %p368 = pneg %p83
        %p369 = pneg %p80
        %p370 = pneg %p104
        %p371 = pneg %p101
        %p372 = pneg %p125
        %p373 = pneg %p122
        %p374 = pneg %p146
        %p375 = pneg %p143
        %p376 = pneg %p167
        %p377 = pneg %p164
        %p378 = pneg %p188
        %p379 = pneg %p185
        %p380 = pneg %p216
        %p381 = pneg %p213
        %s382 = sand.u32 %s203, 1
        %s383 = scalar_lea.sflag [#allocation4], %s382
        %s384 = sand.u32 %s203, 1
        %s385 = smul.addr %s384, 4
        %s386 = scalar_lea.vmem [#allocation14], %s385
        %v387 = vld [vmem:[%s332] sm:$0xf]
        %vm388 = vcmask 1043456
        %v389 = vsel %vm388, %v387, 0.0
        %v390 = vrot.slane %v389, 4
        %v391 = vadd.f32 %v389, %v390
        %v392 = vrot.slane %v391, 2
        %v393 = vadd.f32 %v391, %v392
        %v394 = vrot.slane %v393, 1
        %v395 = vadd.f32 %v393, %v394
        %v396 = vrcp.pop 4.0
        %v397 = vmul.f32 %v395, %v396
        %v398 = vmul.f32 %v387, %v387
        %v399 = vsel %vm388, %v398, 0.0
        %v400 = vrot.slane %v399, 4
        %v401 = vadd.f32 %v399, %v400
        %v402 = vrot.slane %v401, 2
        %v403 = vadd.f32 %v401, %v402
        %v404 = vrot.slane %v403, 1
        %v405 = vadd.f32 %v403, %v404
        %v406 = vmul.f32 %v405, %v396
        %v407 = vmul.f32 %v397, %v397
        %v408 = vsub.f32 %v406, %v407
        %v409 = vmax.f32 %v408, 0.0
        %v410 = vsub.f32 %v387, %v397
        %v411 = vadd.f32 %v409, 1e-06
        %v412 = vrsqrt.pop %v411
        %v413 = vmul.f32 %v410, %v412
        %v414 = vld [vmem:[#allocation5] sm:$0xf]
        %v415 = vld [vmem:[#allocation7] sm:$0xf]
        %417 = vset.pattern.permute.xlu0 0
        %418 = vperm.xlu0 %417, %v415
        %v419 = vpop.permute.xlu0 %418
        %vm421 = vcmask 31744
        %v423 = vsel %vm421, %v414, 0
        %v426 = vsel %vm388, %v413, 0
        %428 = vmatprep.subr.mxu0 0.0
        %v429 = vand.u32 %v426, 4294901760
        %430 = vmatpush1.msra.mxu0 %v429
        %431 = vmatprep.subr.mxu0 0.0
        %432 = vmatpush1.msra.mxu0 0.0
        %433 = vmatprep.subr.mxu0 0.0
        %434 = vmatpush1.msra.mxu0 0.0
        %435 = vmatprep.subr.mxu0 0.0
        %436 = vmatpush1.msra.mxu0 0.0
        %437 = vmatprep.subr.mxu0 0.0
        %438 = vmatpush1.msra.mxu0 0.0
        %439 = vmatprep.subr.mxu0 0.0
        %440 = vmatpush1.msra.mxu0 0.0
        %441 = vmatprep.subr.mxu0 0.0
        %442 = vmatpush1.msra.mxu0 0.0
        %443 = vmatprep.subr.mxu0 0.0
        %444 = vmatpush1.msra.mxu0 0.0
        %445 = vmatprep.subr.mxu0 0.0
        %446 = vmatpush1.msra.mxu0 0.0
        %447 = vmatprep.subr.mxu0 0.0
        %448 = vmatpush1.msra.mxu0 0.0
        %449 = vmatprep.subr.mxu0 0.0
        %450 = vmatpush1.msra.mxu0 0.0
        %451 = vmatprep.subr.mxu0 0.0
        %452 = vmatpush1.msra.mxu0 0.0
        %453 = vmatprep.subr.mxu0 0.0
        %454 = vmatpush1.msra.mxu0 0.0
        %455 = vmatprep.subr.mxu0 0.0
        %456 = vmatpush1.msra.mxu0 0.0
        %457 = vmatprep.subr.mxu0 0.0
        %458 = vmatpush1.msra.mxu0 0.0
        %459 = vmatprep.subr.mxu0 0.0
        %460 = vmatpush1.msra.mxu0 0.0
        %461 = vmatprep.subr.mxu0 0.0
        %462 = vmatpush1.msra.mxu0 0.0
        %463 = vmatprep.subr.mxu0 0.0
        %464 = vmatpush1.msra.mxu0 0.0
        %465 = vmatprep.subr.mxu0 0.0
        %466 = vmatpush1.msra.mxu0 0.0
        %467 = vmatprep.subr.mxu0 0.0
        %468 = vmatpush1.msra.mxu0 0.0
        %469 = vmatprep.subr.mxu0 0.0
        %470 = vmatpush1.msra.mxu0 0.0
        %471 = vmatprep.subr.mxu0 0.0
        %472 = vmatpush1.msra.mxu0 0.0
        %473 = vmatprep.subr.mxu0 0.0
        %474 = vmatpush1.msra.mxu0 0.0
        %475 = vmatprep.subr.mxu0 0.0
        %476 = vmatpush1.msra.mxu0 0.0
        %477 = vmatprep.subr.mxu0 0.0
        %478 = vmatpush1.msra.mxu0 0.0
        %479 = vmatprep.subr.mxu0 0.0
        %480 = vmatpush1.msra.mxu0 0.0
        %481 = vmatprep.subr.mxu0 0.0
        %482 = vmatpush1.msra.mxu0 0.0
        %483 = vmatprep.subr.mxu0 0.0
        %484 = vmatpush1.msra.mxu0 0.0
        %485 = vmatprep.subr.mxu0 0.0
        %486 = vmatpush1.msra.mxu0 0.0
        %487 = vmatprep.subr.mxu0 0.0
        %488 = vmatpush1.msra.mxu0 0.0
        %489 = vmatprep.subr.mxu0 0.0
        %490 = vmatpush1.msra.mxu0 0.0
        %491 = vmatprep.subr.mxu0 0.0
        %492 = vmatpush1.msra.mxu0 0.0
        %493 = vmatprep.mubr.f32.mxu0 0.0
        %v494 = vand.u32 %v423, 4294901760
        %v495 = vsub.f32 %v423, %v494
        %v496 = vand.u32 %v495, 4294901760
        %v497 = vsub.f32 %v495, %v496
        %v498 = vand.u32 %v497, 4294901760
        %499 = vmatmul.mubr.f32.gmra.mrb[0].mxu0 %v498
        %v500 = vpop.f32.mrb[0].mxu0
        %v501 = vadd.f32 %v419, %v500
        %v502 = vpop.f32.mrb[0].mxu0
        %503 = vdwg.mxu0
        %504 = vmatprep.subr.mxu0 0.0
        %v505 = vand.u32 %v426, 4294901760
        %v506 = vsub.f32 %v426, %v505
        %v507 = vand.u32 %v506, 4294901760
        %v508 = vsub.f32 %v506, %v507
        %v509 = vand.u32 %v508, 4294901760
        %510 = vmatpush1.msra.mxu0 %v509
        %511 = vmatprep.subr.mxu0 0.0
        %512 = vmatpush1.msra.mxu0 0.0
        %513 = vmatprep.subr.mxu0 0.0
        %514 = vmatpush1.msra.mxu0 0.0
        %515 = vmatprep.subr.mxu0 0.0
        %516 = vmatpush1.msra.mxu0 0.0
        %517 = vmatprep.subr.mxu0 0.0
        %518 = vmatpush1.msra.mxu0 0.0
        %519 = vmatprep.subr.mxu0 0.0
        %520 = vmatpush1.msra.mxu0 0.0
        %521 = vmatprep.subr.mxu0 0.0
        %522 = vmatpush1.msra.mxu0 0.0
        %523 = vmatprep.subr.mxu0 0.0
        %524 = vmatpush1.msra.mxu0 0.0
        %525 = vmatprep.subr.mxu0 0.0
        %526 = vmatpush1.msra.mxu0 0.0
        %527 = vmatprep.subr.mxu0 0.0
        %528 = vmatpush1.msra.mxu0 0.0
        %529 = vmatprep.subr.mxu0 0.0
        %530 = vmatpush1.msra.mxu0 0.0
        %531 = vmatprep.subr.mxu0 0.0
        %532 = vmatpush1.msra.mxu0 0.0
        %533 = vmatprep.subr.mxu0 0.0
        %534 = vmatpush1.msra.mxu0 0.0
        %535 = vmatprep.subr.mxu0 0.0
        %536 = vmatpush1.msra.mxu0 0.0
        %537 = vmatprep.subr.mxu0 0.0
        %538 = vmatpush1.msra.mxu0 0.0
        %539 = vmatprep.subr.mxu0 0.0
        %540 = vmatpush1.msra.mxu0 0.0
        %541 = vmatprep.subr.mxu0 0.0
        %542 = vmatpush1.msra.mxu0 0.0
        %543 = vmatprep.subr.mxu0 0.0
        %544 = vmatpush1.msra.mxu0 0.0
        %545 = vmatprep.subr.mxu0 0.0
        %546 = vmatpush1.msra.mxu0 0.0
        %547 = vmatprep.subr.mxu0 0.0
        %548 = vmatpush1.msra.mxu0 0.0
        %549 = vmatprep.subr.mxu0 0.0
        %550 = vmatpush1.msra.mxu0 0.0
        %551 = vmatprep.subr.mxu0 0.0
        %552 = vmatpush1.msra.mxu0 0.0
        %553 = vmatprep.subr.mxu0 0.0
        %554 = vmatpush1.msra.mxu0 0.0
        %555 = vmatprep.subr.mxu0 0.0
        %556 = vmatpush1.msra.mxu0 0.0
        %557 = vmatprep.subr.mxu0 0.0
        %558 = vmatpush1.msra.mxu0 0.0
        %559 = vmatprep.subr.mxu0 0.0
        %560 = vmatpush1.msra.mxu0 0.0
        %561 = vmatprep.subr.mxu0 0.0
        %562 = vmatpush1.msra.mxu0 0.0
        %563 = vmatprep.subr.mxu0 0.0
        %564 = vmatpush1.msra.mxu0 0.0
        %565 = vmatprep.subr.mxu0 0.0
        %566 = vmatpush1.msra.mxu0 0.0
        %567 = vmatprep.subr.mxu0 0.0
        %568 = vmatpush1.msra.mxu0 0.0
        %569 = vmatprep.subr.mxu0 0.0
        %570 = vmatpush1.msra.mxu0 0.0
        %571 = vmatprep.subr.mxu0 0.0
        %572 = vmatpush1.msra.mxu0 0.0
        %573 = vmatprep.mubr.f32.mxu0 0.0
        %v574 = vand.u32 %v423, 4294901760
        %575 = vmatmul.mubr.f32.gmra.mrb[0].mxu0 %v574
        %v576 = vpop.f32.mrb[0].mxu0
        %v577 = vadd.f32 %v501, %v576
        %v578 = vpop.f32.mrb[0].mxu0
        %579 = vdwg.mxu0
        %580 = vmatprep.subr.mxu0 0.0
        %v581 = vand.u32 %v426, 4294901760
        %v582 = vsub.f32 %v426, %v581
        %583 = vmatpush1.msra.mxu0 %v582
        %584 = vmatprep.subr.mxu0 0.0
        %585 = vmatpush1.msra.mxu0 0.0
        %586 = vmatprep.subr.mxu0 0.0
        %587 = vmatpush1.msra.mxu0 0.0
        %588 = vmatprep.subr.mxu0 0.0
        %589 = vmatpush1.msra.mxu0 0.0
        %590 = vmatprep.subr.mxu0 0.0
        %591 = vmatpush1.msra.mxu0 0.0
        %592 = vmatprep.subr.mxu0 0.0
        %593 = vmatpush1.msra.mxu0 0.0
        %594 = vmatprep.subr.mxu0 0.0
        %595 = vmatpush1.msra.mxu0 0.0
        %596 = vmatprep.subr.mxu0 0.0
        %597 = vmatpush1.msra.mxu0 0.0
        %598 = vmatprep.subr.mxu0 0.0
        %599 = vmatpush1.msra.mxu0 0.0
        %600 = vmatprep.subr.mxu0 0.0
        %601 = vmatpush1.msra.mxu0 0.0
        %602 = vmatprep.subr.mxu0 0.0
        %603 = vmatpush1.msra.mxu0 0.0
        %604 = vmatprep.subr.mxu0 0.0
        %605 = vmatpush1.msra.mxu0 0.0
        %606 = vmatprep.subr.mxu0 0.0
        %607 = vmatpush1.msra.mxu0 0.0
        %608 = vmatprep.subr.mxu0 0.0
        %609 = vmatpush1.msra.mxu0 0.0
        %610 = vmatprep.subr.mxu0 0.0
        %611 = vmatpush1.msra.mxu0 0.0
        %612 = vmatprep.subr.mxu0 0.0
        %613 = vmatpush1.msra.mxu0 0.0
        %614 = vmatprep.subr.mxu0 0.0
        %615 = vmatpush1.msra.mxu0 0.0
        %616 = vmatprep.subr.mxu0 0.0
        %617 = vmatpush1.msra.mxu0 0.0
        %618 = vmatprep.subr.mxu0 0.0
        %619 = vmatpush1.msra.mxu0 0.0
        %620 = vmatprep.subr.mxu0 0.0
        %621 = vmatpush1.msra.mxu0 0.0
        %622 = vmatprep.subr.mxu0 0.0
        %623 = vmatpush1.msra.mxu0 0.0
        %624 = vmatprep.subr.mxu0 0.0
        %625 = vmatpush1.msra.mxu0 0.0
        %626 = vmatprep.subr.mxu0 0.0
        %627 = vmatpush1.msra.mxu0 0.0
        %628 = vmatprep.subr.mxu0 0.0
        %629 = vmatpush1.msra.mxu0 0.0
        %630 = vmatprep.subr.mxu0 0.0
        %631 = vmatpush1.msra.mxu0 0.0
        %632 = vmatprep.subr.mxu0 0.0
        %633 = vmatpush1.msra.mxu0 0.0
        %634 = vmatprep.subr.mxu0 0.0
        %635 = vmatpush1.msra.mxu0 0.0
        %636 = vmatprep.subr.mxu0 0.0
        %637 = vmatpush1.msra.mxu0 0.0
        %638 = vmatprep.subr.mxu0 0.0
        %639 = vmatpush1.msra.mxu0 0.0
        %640 = vmatprep.subr.mxu0 0.0
        %641 = vmatpush1.msra.mxu0 0.0
        %642 = vmatprep.subr.mxu0 0.0
        %643 = vmatpush1.msra.mxu0 0.0
        %644 = vmatprep.subr.mxu0 0.0
        %645 = vmatpush1.msra.mxu0 0.0
        %646 = vmatprep.mubr.f32.mxu0 0.0
        %v647 = vand.u32 %v423, 4294901760
        %v648 = vsub.f32 %v423, %v647
        %649 = vmatmul.mubr.f32.gmra.mrb[0].mxu0 %v648
        %v650 = vpop.f32.mrb[0].mxu0
        %v651 = vadd.f32 %v577, %v650
        %v652 = vpop.f32.mrb[0].mxu0
        %653 = vdwg.mxu0
        %654 = vmatprep.subr.mxu0 0.0
        %v655 = vand.u32 %v426, 4294901760
        %656 = vmatpush1.msra.mxu0 %v655
        %657 = vmatprep.subr.mxu0 0.0
        %658 = vmatpush1.msra.mxu0 0.0
        %659 = vmatprep.subr.mxu0 0.0
        %660 = vmatpush1.msra.mxu0 0.0
        %661 = vmatprep.subr.mxu0 0.0
        %662 = vmatpush1.msra.mxu0 0.0
        %663 = vmatprep.subr.mxu0 0.0
        %664 = vmatpush1.msra.mxu0 0.0
        %665 = vmatprep.subr.mxu0 0.0
        %666 = vmatpush1.msra.mxu0 0.0
        %667 = vmatprep.subr.mxu0 0.0
        %668 = vmatpush1.msra.mxu0 0.0
        %669 = vmatprep.subr.mxu0 0.0
        %670 = vmatpush1.msra.mxu0 0.0
        %671 = vmatprep.subr.mxu0 0.0
        %672 = vmatpush1.msra.mxu0 0.0
        %673 = vmatprep.subr.mxu0 0.0
        %674 = vmatpush1.msra.mxu0 0.0
        %675 = vmatprep.subr.mxu0 0.0
        %676 = vmatpush1.msra.mxu0 0.0
        %677 = vmatprep.subr.mxu0 0.0
        %678 = vmatpush1.msra.mxu0 0.0
        %679 = vmatprep.subr.mxu0 0.0
        %680 = vmatpush1.msra.mxu0 0.0
        %681 = vmatprep.subr.mxu0 0.0
        %682 = vmatpush1.msra.mxu0 0.0
        %683 = vmatprep.subr.mxu0 0.0
        %684 = vmatpush1.msra.mxu0 0.0
        %685 = vmatprep.subr.mxu0 0.0
        %686 = vmatpush1.msra.mxu0 0.0
        %687 = vmatprep.subr.mxu0 0.0
        %688 = vmatpush1.msra.mxu0 0.0
        %689 = vmatprep.subr.mxu0 0.0
        %690 = vmatpush1.msra.mxu0 0.0
        %691 = vmatprep.subr.mxu0 0.0
        %692 = vmatpush1.msra.mxu0 0.0
        %693 = vmatprep.subr.mxu0 0.0
        %694 = vmatpush1.msra.mxu0 0.0
        %695 = vmatprep.subr.mxu0 0.0
        %696 = vmatpush1.msra.mxu0 0.0
        %697 = vmatprep.subr.mxu0 0.0
        %698 = vmatpush1.msra.mxu0 0.0
        %699 = vmatprep.subr.mxu0 0.0
        %700 = vmatpush1.msra.mxu0 0.0
        %701 = vmatprep.subr.mxu0 0.0
        %702 = vmatpush1.msra.mxu0 0.0
        %703 = vmatprep.subr.mxu0 0.0
        %704 = vmatpush1.msra.mxu0 0.0
        %705 = vmatprep.subr.mxu0 0.0
        %706 = vmatpush1.msra.mxu0 0.0
        %707 = vmatprep.subr.mxu0 0.0
        %708 = vmatpush1.msra.mxu0 0.0
        %709 = vmatprep.subr.mxu0 0.0
        %710 = vmatpush1.msra.mxu0 0.0
        %711 = vmatprep.subr.mxu0 0.0
        %712 = vmatpush1.msra.mxu0 0.0
        %713 = vmatprep.subr.mxu0 0.0
        %714 = vmatpush1.msra.mxu0 0.0
        %715 = vmatprep.subr.mxu0 0.0
        %716 = vmatpush1.msra.mxu0 0.0
        %717 = vmatprep.subr.mxu0 0.0
        %718 = vmatpush1.msra.mxu0 0.0
        %719 = vmatprep.mubr.f32.mxu0 0.0
        %v720 = vand.u32 %v423, 4294901760
        %v721 = vsub.f32 %v423, %v720
        %v722 = vand.u32 %v721, 4294901760
        %723 = vmatmul.mubr.f32.gmra.mrb[0].mxu0 %v722
        %v724 = vpop.f32.mrb[0].mxu0
        %v725 = vadd.f32 %v651, %v724
        %v726 = vpop.f32.mrb[0].mxu0
        %727 = vdwg.mxu0
        %728 = vmatprep.subr.mxu0 0.0
        %v729 = vand.u32 %v426, 4294901760
        %v730 = vsub.f32 %v426, %v729
        %v731 = vand.u32 %v730, 4294901760
        %732 = vmatpush1.msra.mxu0 %v731
        %733 = vmatprep.subr.mxu0 0.0
        %734 = vmatpush1.msra.mxu0 0.0
        %735 = vmatprep.subr.mxu0 0.0
        %736 = vmatpush1.msra.mxu0 0.0
        %737 = vmatprep.subr.mxu0 0.0
        %738 = vmatpush1.msra.mxu0 0.0
        %739 = vmatprep.subr.mxu0 0.0
        %740 = vmatpush1.msra.mxu0 0.0
        %741 = vmatprep.subr.mxu0 0.0
        %742 = vmatpush1.msra.mxu0 0.0
        %743 = vmatprep.subr.mxu0 0.0
        %744 = vmatpush1.msra.mxu0 0.0
        %745 = vmatprep.subr.mxu0 0.0
        %746 = vmatpush1.msra.mxu0 0.0
        %747 = vmatprep.subr.mxu0 0.0
        %748 = vmatpush1.msra.mxu0 0.0
        %749 = vmatprep.subr.mxu0 0.0
        %750 = vmatpush1.msra.mxu0 0.0
        %751 = vmatprep.subr.mxu0 0.0
        %752 = vmatpush1.msra.mxu0 0.0
        %753 = vmatprep.subr.mxu0 0.0
        %754 = vmatpush1.msra.mxu0 0.0
        %755 = vmatprep.subr.mxu0 0.0
        %756 = vmatpush1.msra.mxu0 0.0
        %757 = vmatprep.subr.mxu0 0.0
        %758 = vmatpush1.msra.mxu0 0.0
        %759 = vmatprep.subr.mxu0 0.0
        %760 = vmatpush1.msra.mxu0 0.0
        %761 = vmatprep.subr.mxu0 0.0
        %762 = vmatpush1.msra.mxu0 0.0
        %763 = vmatprep.subr.mxu0 0.0
        %764 = vmatpush1.msra.mxu0 0.0
        %765 = vmatprep.subr.mxu0 0.0
        %766 = vmatpush1.msra.mxu0 0.0
        %767 = vmatprep.subr.mxu0 0.0
        %768 = vmatpush1.msra.mxu0 0.0
        %769 = vmatprep.subr.mxu0 0.0
        %770 = vmatpush1.msra.mxu0 0.0
        %771 = vmatprep.subr.mxu0 0.0
        %772 = vmatpush1.msra.mxu0 0.0
        %773 = vmatprep.subr.mxu0 0.0
        %774 = vmatpush1.msra.mxu0 0.0
        %775 = vmatprep.subr.mxu0 0.0
        %776 = vmatpush1.msra.mxu0 0.0
        %777 = vmatprep.subr.mxu0 0.0
        %778 = vmatpush1.msra.mxu0 0.0
        %779 = vmatprep.subr.mxu0 0.0
        %780 = vmatpush1.msra.mxu0 0.0
        %781 = vmatprep.subr.mxu0 0.0
        %782 = vmatpush1.msra.mxu0 0.0
        %783 = vmatprep.subr.mxu0 0.0
        %784 = vmatpush1.msra.mxu0 0.0
        %785 = vmatprep.subr.mxu0 0.0
        %786 = vmatpush1.msra.mxu0 0.0
        %787 = vmatprep.subr.mxu0 0.0
        %788 = vmatpush1.msra.mxu0 0.0
        %789 = vmatprep.subr.mxu0 0.0
        %790 = vmatpush1.msra.mxu0 0.0
        %791 = vmatprep.subr.mxu0 0.0
        %792 = vmatpush1.msra.mxu0 0.0
        %793 = vmatprep.subr.mxu0 0.0
        %794 = vmatpush1.msra.mxu0 0.0
        %795 = vmatprep.mubr.f32.mxu0 0.0
        %v796 = vand.u32 %v423, 4294901760
        %797 = vmatmul.mubr.f32.gmra.mrb[0].mxu0 %v796
        %v798 = vpop.f32.mrb[0].mxu0
        %v799 = vadd.f32 %v725, %v798
        %v800 = vpop.f32.mrb[0].mxu0
        %801 = vdwg.mxu0
        %802 = vmatprep.subr.mxu0 0.0
        %v803 = vand.u32 %v426, 4294901760
        %804 = vmatpush1.msra.mxu0 %v803
        %805 = vmatprep.subr.mxu0 0.0
        %806 = vmatpush1.msra.mxu0 0.0
        %807 = vmatprep.subr.mxu0 0.0
        %808 = vmatpush1.msra.mxu0 0.0
        %809 = vmatprep.subr.mxu0 0.0
        %810 = vmatpush1.msra.mxu0 0.0
        %811 = vmatprep.subr.mxu0 0.0
        %812 = vmatpush1.msra.mxu0 0.0
        %813 = vmatprep.subr.mxu0 0.0
        %814 = vmatpush1.msra.mxu0 0.0
        %815 = vmatprep.subr.mxu0 0.0
        %816 = vmatpush1.msra.mxu0 0.0
        %817 = vmatprep.subr.mxu0 0.0
        %818 = vmatpush1.msra.mxu0 0.0
        %819 = vmatprep.subr.mxu0 0.0
        %820 = vmatpush1.msra.mxu0 0.0
        %821 = vmatprep.subr.mxu0 0.0
        %822 = vmatpush1.msra.mxu0 0.0
        %823 = vmatprep.subr.mxu0 0.0
        %824 = vmatpush1.msra.mxu0 0.0
        %825 = vmatprep.subr.mxu0 0.0
        %826 = vmatpush1.msra.mxu0 0.0
        %827 = vmatprep.subr.mxu0 0.0
        %828 = vmatpush1.msra.mxu0 0.0
        %829 = vmatprep.subr.mxu0 0.0
        %830 = vmatpush1.msra.mxu0 0.0
        %831 = vmatprep.subr.mxu0 0.0
        %832 = vmatpush1.msra.mxu0 0.0
        %833 = vmatprep.subr.mxu0 0.0
        %834 = vmatpush1.msra.mxu0 0.0
        %835 = vmatprep.subr.mxu0 0.0
        %836 = vmatpush1.msra.mxu0 0.0
        %837 = vmatprep.subr.mxu0 0.0
        %838 = vmatpush1.msra.mxu0 0.0
        %839 = vmatprep.subr.mxu0 0.0
        %840 = vmatpush1.msra.mxu0 0.0
        %841 = vmatprep.subr.mxu0 0.0
        %842 = vmatpush1.msra.mxu0 0.0
        %843 = vmatprep.subr.mxu0 0.0
        %844 = vmatpush1.msra.mxu0 0.0
        %845 = vmatprep.subr.mxu0 0.0
        %846 = vmatpush1.msra.mxu0 0.0
        %847 = vmatprep.subr.mxu0 0.0
        %848 = vmatpush1.msra.mxu0 0.0
        %849 = vmatprep.subr.mxu0 0.0
        %850 = vmatpush1.msra.mxu0 0.0
        %851 = vmatprep.subr.mxu0 0.0
        %852 = vmatpush1.msra.mxu0 0.0
        %853 = vmatprep.subr.mxu0 0.0
        %854 = vmatpush1.msra.mxu0 0.0
        %855 = vmatprep.subr.mxu0 0.0
        %856 = vmatpush1.msra.mxu0 0.0
        %857 = vmatprep.subr.mxu0 0.0
        %858 = vmatpush1.msra.mxu0 0.0
        %859 = vmatprep.subr.mxu0 0.0
        %860 = vmatpush1.msra.mxu0 0.0
        %861 = vmatprep.subr.mxu0 0.0
        %862 = vmatpush1.msra.mxu0 0.0
        %863 = vmatprep.subr.mxu0 0.0
        %864 = vmatpush1.msra.mxu0 0.0
        %865 = vmatprep.subr.mxu0 0.0
        %866 = vmatpush1.msra.mxu0 0.0
        %867 = vmatprep.mubr.f32.mxu0 0.0
        %v868 = vand.u32 %v423, 4294901760
        %869 = vmatmul.mubr.f32.gmra.mrb[0].mxu0 %v868
        %v870 = vpop.f32.mrb[0].mxu0
        %v871 = vadd.f32 %v799, %v870
        %v872 = vpop.f32.mrb[0].mxu0
        %873 = vdwg.mxu0
        %v874 = vld [vmem:[#allocation8] sm:$0xf]
        %v875 = vld [vmem:[#allocation10] sm:$0xf]
        %877 = vset.pattern.permute.xlu0 0
        %878 = vperm.xlu0 %877, %v875
        %v879 = vpop.permute.xlu0 %878
        %v882 = vsel %vm421, %v874, 0
        %884 = vmatprep.subr.mxu0 0.0
        %v885 = vand.u32 %v426, 4294901760
        %886 = vmatpush1.msra.mxu0 %v885
        %887 = vmatprep.subr.mxu0 0.0
        %888 = vmatpush1.msra.mxu0 0.0
        %889 = vmatprep.subr.mxu0 0.0
        %890 = vmatpush1.msra.mxu0 0.0
        %891 = vmatprep.subr.mxu0 0.0
        %892 = vmatpush1.msra.mxu0 0.0
        %893 = vmatprep.subr.mxu0 0.0
        %894 = vmatpush1.msra.mxu0 0.0
        %895 = vmatprep.subr.mxu0 0.0
        %896 = vmatpush1.msra.mxu0 0.0
        %897 = vmatprep.subr.mxu0 0.0
        %898 = vmatpush1.msra.mxu0 0.0
        %899 = vmatprep.subr.mxu0 0.0
        %900 = vmatpush1.msra.mxu0 0.0
        %901 = vmatprep.subr.mxu0 0.0
        %902 = vmatpush1.msra.mxu0 0.0
        %903 = vmatprep.subr.mxu0 0.0
        %904 = vmatpush1.msra.mxu0 0.0
        %905 = vmatprep.subr.mxu0 0.0
        %906 = vmatpush1.msra.mxu0 0.0
        %907 = vmatprep.subr.mxu0 0.0
        %908 = vmatpush1.msra.mxu0 0.0
        %909 = vmatprep.subr.mxu0 0.0
        %910 = vmatpush1.msra.mxu0 0.0
        %911 = vmatprep.subr.mxu0 0.0
        %912 = vmatpush1.msra.mxu0 0.0
        %913 = vmatprep.subr.mxu0 0.0
        %914 = vmatpush1.msra.mxu0 0.0
        %915 = vmatprep.subr.mxu0 0.0
        %916 = vmatpush1.msra.mxu0 0.0
        %917 = vmatprep.subr.mxu0 0.0
        %918 = vmatpush1.msra.mxu0 0.0
        %919 = vmatprep.subr.mxu0 0.0
        %920 = vmatpush1.msra.mxu0 0.0
        %921 = vmatprep.subr.mxu0 0.0
        %922 = vmatpush1.msra.mxu0 0.0
        %923 = vmatprep.subr.mxu0 0.0
        %924 = vmatpush1.msra.mxu0 0.0
        %925 = vmatprep.subr.mxu0 0.0
        %926 = vmatpush1.msra.mxu0 0.0
        %927 = vmatprep.subr.mxu0 0.0
        %928 = vmatpush1.msra.mxu0 0.0
        %929 = vmatprep.subr.mxu0 0.0
        %930 = vmatpush1.msra.mxu0 0.0
        %931 = vmatprep.subr.mxu0 0.0
        %932 = vmatpush1.msra.mxu0 0.0
        %933 = vmatprep.subr.mxu0 0.0
        %934 = vmatpush1.msra.mxu0 0.0
        %935 = vmatprep.subr.mxu0 0.0
        %936 = vmatpush1.msra.mxu0 0.0
        %937 = vmatprep.subr.mxu0 0.0
        %938 = vmatpush1.msra.mxu0 0.0
        %939 = vmatprep.subr.mxu0 0.0
        %940 = vmatpush1.msra.mxu0 0.0
        %941 = vmatprep.subr.mxu0 0.0
        %942 = vmatpush1.msra.mxu0 0.0
        %943 = vmatprep.subr.mxu0 0.0
        %944 = vmatpush1.msra.mxu0 0.0
        %945 = vmatprep.subr.mxu0 0.0
        %946 = vmatpush1.msra.mxu0 0.0
        %947 = vmatprep.subr.mxu0 0.0
        %948 = vmatpush1.msra.mxu0 0.0
        %949 = vmatprep.mubr.f32.mxu0 0.0
        %v950 = vand.u32 %v882, 4294901760
        %v951 = vsub.f32 %v882, %v950
        %v952 = vand.u32 %v951, 4294901760
        %v953 = vsub.f32 %v951, %v952
        %v954 = vand.u32 %v953, 4294901760
        %955 = vmatmul.mubr.f32.gmra.mrb[0].mxu0 %v954
        %v956 = vpop.f32.mrb[0].mxu0
        %v957 = vadd.f32 %v879, %v956
        %v958 = vpop.f32.mrb[0].mxu0
        %959 = vdwg.mxu0
        %960 = vmatprep.subr.mxu0 0.0
        %v961 = vand.u32 %v426, 4294901760
        %v962 = vsub.f32 %v426, %v961
        %v963 = vand.u32 %v962, 4294901760
        %v964 = vsub.f32 %v962, %v963
        %v965 = vand.u32 %v964, 4294901760
        %966 = vmatpush1.msra.mxu0 %v965
        %967 = vmatprep.subr.mxu0 0.0
        %968 = vmatpush1.msra.mxu0 0.0
        %969 = vmatprep.subr.mxu0 0.0
        %970 = vmatpush1.msra.mxu0 0.0
        %971 = vmatprep.subr.mxu0 0.0
        %972 = vmatpush1.msra.mxu0 0.0
        %973 = vmatprep.subr.mxu0 0.0
        %974 = vmatpush1.msra.mxu0 0.0
        %975 = vmatprep.subr.mxu0 0.0
        %976 = vmatpush1.msra.mxu0 0.0
        %977 = vmatprep.subr.mxu0 0.0
        %978 = vmatpush1.msra.mxu0 0.0
        %979 = vmatprep.subr.mxu0 0.0
        %980 = vmatpush1.msra.mxu0 0.0
        %981 = vmatprep.subr.mxu0 0.0
        %982 = vmatpush1.msra.mxu0 0.0
        %983 = vmatprep.subr.mxu0 0.0
        %984 = vmatpush1.msra.mxu0 0.0
        %985 = vmatprep.subr.mxu0 0.0
        %986 = vmatpush1.msra.mxu0 0.0
        %987 = vmatprep.subr.mxu0 0.0
        %988 = vmatpush1.msra.mxu0 0.0
        %989 = vmatprep.subr.mxu0 0.0
        %990 = vmatpush1.msra.mxu0 0.0
        %991 = vmatprep.subr.mxu0 0.0
        %992 = vmatpush1.msra.mxu0 0.0
        %993 = vmatprep.subr.mxu0 0.0
        %994 = vmatpush1.msra.mxu0 0.0
        %995 = vmatprep.subr.mxu0 0.0
        %996 = vmatpush1.msra.mxu0 0.0
        %997 = vmatprep.subr.mxu0 0.0
        %998 = vmatpush1.msra.mxu0 0.0
        %999 = vmatprep.subr.mxu0 0.0
        %1000 = vmatpush1.msra.mxu0 0.0
        %1001 = vmatprep.subr.mxu0 0.0
        %1002 = vmatpush1.msra.mxu0 0.0
        %1003 = vmatprep.subr.mxu0 0.0
        %1004 = vmatpush1.msra.mxu0 0.0
        %1005 = vmatprep.subr.mxu0 0.0
        %1006 = vmatpush1.msra.mxu0 0.0
        %1007 = vmatprep.subr.mxu0 0.0
        %1008 = vmatpush1.msra.mxu0 0.0
        %1009 = vmatprep.subr.mxu0 0.0
        %1010 = vmatpush1.msra.mxu0 0.0
        %1011 = vmatprep.subr.mxu0 0.0
        %1012 = vmatpush1.msra.mxu0 0.0
        %1013 = vmatprep.subr.mxu0 0.0
        %1014 = vmatpush1.msra.mxu0 0.0
        %1015 = vmatprep.subr.mxu0 0.0
        %1016 = vmatpush1.msra.mxu0 0.0
        %1017 = vmatprep.subr.mxu0 0.0
        %1018 = vmatpush1.msra.mxu0 0.0
        %1019 = vmatprep.subr.mxu0 0.0
        %1020 = vmatpush1.msra.mxu0 0.0
        %1021 = vmatprep.subr.mxu0 0.0
        %1022 = vmatpush1.msra.mxu0 0.0
        %1023 = vmatprep.subr.mxu0 0.0
        %1024 = vmatpush1.msra.mxu0 0.0
        %1025 = vmatprep.subr.mxu0 0.0
        %1026 = vmatpush1.msra.mxu0 0.0
        %1027 = vmatprep.subr.mxu0 0.0
        %1028 = vmatpush1.msra.mxu0 0.0
        %1029 = vmatprep.mubr.f32.mxu0 0.0
        %v1030 = vand.u32 %v882, 4294901760
        %1031 = vmatmul.mubr.f32.gmra.mrb[0].mxu0 %v1030
        %v1032 = vpop.f32.mrb[0].mxu0
        %v1033 = vadd.f32 %v957, %v1032
        %v1034 = vpop.f32.mrb[0].mxu0
        %1035 = vdwg.mxu0
        %1036 = vmatprep.subr.mxu0 0.0
        %v1037 = vand.u32 %v426, 4294901760
        %v1038 = vsub.f32 %v426, %v1037
        %1039 = vmatpush1.msra.mxu0 %v1038
        %1040 = vmatprep.subr.mxu0 0.0
        %1041 = vmatpush1.msra.mxu0 0.0
        %1042 = vmatprep.subr.mxu0 0.0
        %1043 = vmatpush1.msra.mxu0 0.0
        %1044 = vmatprep.subr.mxu0 0.0
        %1045 = vmatpush1.msra.mxu0 0.0
        %1046 = vmatprep.subr.mxu0 0.0
        %1047 = vmatpush1.msra.mxu0 0.0
        %1048 = vmatprep.subr.mxu0 0.0
        %1049 = vmatpush1.msra.mxu0 0.0
        %1050 = vmatprep.subr.mxu0 0.0
        %1051 = vmatpush1.msra.mxu0 0.0
        %1052 = vmatprep.subr.mxu0 0.0
        %1053 = vmatpush1.msra.mxu0 0.0
        %1054 = vmatprep.subr.mxu0 0.0
        %1055 = vmatpush1.msra.mxu0 0.0
        %1056 = vmatprep.subr.mxu0 0.0
        %1057 = vmatpush1.msra.mxu0 0.0
        %1058 = vmatprep.subr.mxu0 0.0
        %1059 = vmatpush1.msra.mxu0 0.0
        %1060 = vmatprep.subr.mxu0 0.0
        %1061 = vmatpush1.msra.mxu0 0.0
        %1062 = vmatprep.subr.mxu0 0.0
        %1063 = vmatpush1.msra.mxu0 0.0
        %1064 = vmatprep.subr.mxu0 0.0
        %1065 = vmatpush1.msra.mxu0 0.0
        %1066 = vmatprep.subr.mxu0 0.0
        %1067 = vmatpush1.msra.mxu0 0.0
        %1068 = vmatprep.subr.mxu0 0.0
        %1069 = vmatpush1.msra.mxu0 0.0
        %1070 = vmatprep.subr.mxu0 0.0
        %1071 = vmatpush1.msra.mxu0 0.0
        %1072 = vmatprep.subr.mxu0 0.0
        %1073 = vmatpush1.msra.mxu0 0.0
        %1074 = vmatprep.subr.mxu0 0.0
        %1075 = vmatpush1.msra.mxu0 0.0
        %1076 = vmatprep.subr.mxu0 0.0
        %1077 = vmatpush1.msra.mxu0 0.0
        %1078 = vmatprep.subr.mxu0 0.0
        %1079 = vmatpush1.msra.mxu0 0.0
        %1080 = vmatprep.subr.mxu0 0.0
        %1081 = vmatpush1.msra.mxu0 0.0
        %1082 = vmatprep.subr.mxu0 0.0
        %1083 = vmatpush1.msra.mxu0 0.0
        %1084 = vmatprep.subr.mxu0 0.0
        %1085 = vmatpush1.msra.mxu0 0.0
        %1086 = vmatprep.subr.mxu0 0.0
        %1087 = vmatpush1.msra.mxu0 0.0
        %1088 = vmatprep.subr.mxu0 0.0
        %1089 = vmatpush1.msra.mxu0 0.0
        %1090 = vmatprep.subr.mxu0 0.0
        %1091 = vmatpush1.msra.mxu0 0.0
        %1092 = vmatprep.subr.mxu0 0.0
        %1093 = vmatpush1.msra.mxu0 0.0
        %1094 = vmatprep.subr.mxu0 0.0
        %1095 = vmatpush1.msra.mxu0 0.0
        %1096 = vmatprep.subr.mxu0 0.0
        %1097 = vmatpush1.msra.mxu0 0.0
        %1098 = vmatprep.subr.mxu0 0.0
        %1099 = vmatpush1.msra.mxu0 0.0
        %1100 = vmatprep.subr.mxu0 0.0
        %1101 = vmatpush1.msra.mxu0 0.0
        %1102 = vmatprep.mubr.f32.mxu0 0.0
        %v1103 = vand.u32 %v882, 4294901760
        %v1104 = vsub.f32 %v882, %v1103
        %1105 = vmatmul.mubr.f32.gmra.mrb[0].mxu0 %v1104
        %v1106 = vpop.f32.mrb[0].mxu0
        %v1107 = vadd.f32 %v1033, %v1106
        %v1108 = vpop.f32.mrb[0].mxu0
        %1109 = vdwg.mxu0
        %1110 = vmatprep.subr.mxu0 0.0
        %v1111 = vand.u32 %v426, 4294901760
        %1112 = vmatpush1.msra.mxu0 %v1111
        %1113 = vmatprep.subr.mxu0 0.0
        %1114 = vmatpush1.msra.mxu0 0.0
        %1115 = vmatprep.subr.mxu0 0.0
        %1116 = vmatpush1.msra.mxu0 0.0
        %1117 = vmatprep.subr.mxu0 0.0
        %1118 = vmatpush1.msra.mxu0 0.0
        %1119 = vmatprep.subr.mxu0 0.0
        %1120 = vmatpush1.msra.mxu0 0.0
        %1121 = vmatprep.subr.mxu0 0.0
        %1122 = vmatpush1.msra.mxu0 0.0
        %1123 = vmatprep.subr.mxu0 0.0
        %1124 = vmatpush1.msra.mxu0 0.0
        %1125 = vmatprep.subr.mxu0 0.0
        %1126 = vmatpush1.msra.mxu0 0.0
        %1127 = vmatprep.subr.mxu0 0.0
        %1128 = vmatpush1.msra.mxu0 0.0
        %1129 = vmatprep.subr.mxu0 0.0
        %1130 = vmatpush1.msra.mxu0 0.0
        %1131 = vmatprep.subr.mxu0 0.0
        %1132 = vmatpush1.msra.mxu0 0.0
        %1133 = vmatprep.subr.mxu0 0.0
        %1134 = vmatpush1.msra.mxu0 0.0
        %1135 = vmatprep.subr.mxu0 0.0
        %1136 = vmatpush1.msra.mxu0 0.0
        %1137 = vmatprep.subr.mxu0 0.0
        %1138 = vmatpush1.msra.mxu0 0.0
        %1139 = vmatprep.subr.mxu0 0.0
        %1140 = vmatpush1.msra.mxu0 0.0
        %1141 = vmatprep.subr.mxu0 0.0
        %1142 = vmatpush1.msra.mxu0 0.0
        %1143 = vmatprep.subr.mxu0 0.0
        %1144 = vmatpush1.msra.mxu0 0.0
        %1145 = vmatprep.subr.mxu0 0.0
        %1146 = vmatpush1.msra.mxu0 0.0
        %1147 = vmatprep.subr.mxu0 0.0
        %1148 = vmatpush1.msra.mxu0 0.0
        %1149 = vmatprep.subr.mxu0 0.0
        %1150 = vmatpush1.msra.mxu0 0.0
        %1151 = vmatprep.subr.mxu0 0.0
        %1152 = vmatpush1.msra.mxu0 0.0
        %1153 = vmatprep.subr.mxu0 0.0
        %1154 = vmatpush1.msra.mxu0 0.0
        %1155 = vmatprep.subr.mxu0 0.0
        %1156 = vmatpush1.msra.mxu0 0.0
        %1157 = vmatprep.subr.mxu0 0.0
        %1158 = vmatpush1.msra.mxu0 0.0
        %1159 = vmatprep.subr.mxu0 0.0
        %1160 = vmatpush1.msra.mxu0 0.0
        %1161 = vmatprep.subr.mxu0 0.0
        %1162 = vmatpush1.msra.mxu0 0.0
        %1163 = vmatprep.subr.mxu0 0.0
        %1164 = vmatpush1.msra.mxu0 0.0
        %1165 = vmatprep.subr.mxu0 0.0
        %1166 = vmatpush1.msra.mxu0 0.0
        %1167 = vmatprep.subr.mxu0 0.0
        %1168 = vmatpush1.msra.mxu0 0.0
        %1169 = vmatprep.subr.mxu0 0.0
        %1170 = vmatpush1.msra.mxu0 0.0
        %1171 = vmatprep.subr.mxu0 0.0
        %1172 = vmatpush1.msra.mxu0 0.0
        %1173 = vmatprep.subr.mxu0 0.0
        %1174 = vmatpush1.msra.mxu0 0.0
        %1175 = vmatprep.mubr.f32.mxu0 0.0
        %v1176 = vand.u32 %v882, 4294901760
        %v1177 = vsub.f32 %v882, %v1176
        %v1178 = vand.u32 %v1177, 4294901760
        %1179 = vmatmul.mubr.f32.gmra.mrb[0].mxu0 %v1178
        %v1180 = vpop.f32.mrb[0].mxu0
        %v1181 = vadd.f32 %v1107, %v1180
        %v1182 = vpop.f32.mrb[0].mxu0
        %1183 = vdwg.mxu0
        %1184 = vmatprep.subr.mxu0 0.0
        %v1185 = vand.u32 %v426, 4294901760
        %v1186 = vsub.f32 %v426, %v1185
        %v1187 = vand.u32 %v1186, 4294901760
        %1188 = vmatpush1.msra.mxu0 %v1187
        %1189 = vmatprep.subr.mxu0 0.0
        %1190 = vmatpush1.msra.mxu0 0.0
        %1191 = vmatprep.subr.mxu0 0.0
        %1192 = vmatpush1.msra.mxu0 0.0
        %1193 = vmatprep.subr.mxu0 0.0
        %1194 = vmatpush1.msra.mxu0 0.0
        %1195 = vmatprep.subr.mxu0 0.0
        %1196 = vmatpush1.msra.mxu0 0.0
        %1197 = vmatprep.subr.mxu0 0.0
        %1198 = vmatpush1.msra.mxu0 0.0
        %1199 = vmatprep.subr.mxu0 0.0
        %1200 = vmatpush1.msra.mxu0 0.0
        %1201 = vmatprep.subr.mxu0 0.0
        %1202 = vmatpush1.msra.mxu0 0.0
        %1203 = vmatprep.subr.mxu0 0.0
        %1204 = vmatpush1.msra.mxu0 0.0
        %1205 = vmatprep.subr.mxu0 0.0
        %1206 = vmatpush1.msra.mxu0 0.0
        %1207 = vmatprep.subr.mxu0 0.0
        %1208 = vmatpush1.msra.mxu0 0.0
        %1209 = vmatprep.subr.mxu0 0.0
        %1210 = vmatpush1.msra.mxu0 0.0
        %1211 = vmatprep.subr.mxu0 0.0
        %1212 = vmatpush1.msra.mxu0 0.0
        %1213 = vmatprep.subr.mxu0 0.0
        %1214 = vmatpush1.msra.mxu0 0.0
        %1215 = vmatprep.subr.mxu0 0.0
        %1216 = vmatpush1.msra.mxu0 0.0
        %1217 = vmatprep.subr.mxu0 0.0
        %1218 = vmatpush1.msra.mxu0 0.0
        %1219 = vmatprep.subr.mxu0 0.0
        %1220 = vmatpush1.msra.mxu0 0.0
        %1221 = vmatprep.subr.mxu0 0.0
        %1222 = vmatpush1.msra.mxu0 0.0
        %1223 = vmatprep.subr.mxu0 0.0
        %1224 = vmatpush1.msra.mxu0 0.0
        %1225 = vmatprep.subr.mxu0 0.0
        %1226 = vmatpush1.msra.mxu0 0.0
        %1227 = vmatprep.subr.mxu0 0.0
        %1228 = vmatpush1.msra.mxu0 0.0
        %1229 = vmatprep.subr.mxu0 0.0
        %1230 = vmatpush1.msra.mxu0 0.0
        %1231 = vmatprep.subr.mxu0 0.0
        %1232 = vmatpush1.msra.mxu0 0.0
        %1233 = vmatprep.subr.mxu0 0.0
        %1234 = vmatpush1.msra.mxu0 0.0
        %1235 = vmatprep.subr.mxu0 0.0
        %1236 = vmatpush1.msra.mxu0 0.0
        %1237 = vmatprep.subr.mxu0 0.0
        %1238 = vmatpush1.msra.mxu0 0.0
        %1239 = vmatprep.subr.mxu0 0.0
        %1240 = vmatpush1.msra.mxu0 0.0
        %1241 = vmatprep.subr.mxu0 0.0
        %1242 = vmatpush1.msra.mxu0 0.0
        %1243 = vmatprep.subr.mxu0 0.0
        %1244 = vmatpush1.msra.mxu0 0.0
        %1245 = vmatprep.subr.mxu0 0.0
        %1246 = vmatpush1.msra.mxu0 0.0
        %1247 = vmatprep.subr.mxu0 0.0
        %1248 = vmatpush1.msra.mxu0 0.0
        %1249 = vmatprep.subr.mxu0 0.0
        %1250 = vmatpush1.msra.mxu0 0.0
        %1251 = vmatprep.mubr.f32.mxu0 0.0
        %v1252 = vand.u32 %v882, 4294901760
        %1253 = vmatmul.mubr.f32.gmra.mrb[0].mxu0 %v1252
        %v1254 = vpop.f32.mrb[0].mxu0
        %v1255 = vadd.f32 %v1181, %v1254
        %v1256 = vpop.f32.mrb[0].mxu0
        %1257 = vdwg.mxu0
        %1258 = vmatprep.subr.mxu0 0.0
        %v1259 = vand.u32 %v426, 4294901760
        %1260 = vmatpush1.msra.mxu0 %v1259
        %1261 = vmatprep.subr.mxu0 0.0
        %1262 = vmatpush1.msra.mxu0 0.0
        %1263 = vmatprep.subr.mxu0 0.0
        %1264 = vmatpush1.msra.mxu0 0.0
        %1265 = vmatprep.subr.mxu0 0.0
        %1266 = vmatpush1.msra.mxu0 0.0
        %1267 = vmatprep.subr.mxu0 0.0
        %1268 = vmatpush1.msra.mxu0 0.0
        %1269 = vmatprep.subr.mxu0 0.0
        %1270 = vmatpush1.msra.mxu0 0.0
        %1271 = vmatprep.subr.mxu0 0.0
        %1272 = vmatpush1.msra.mxu0 0.0
        %1273 = vmatprep.subr.mxu0 0.0
        %1274 = vmatpush1.msra.mxu0 0.0
        %1275 = vmatprep.subr.mxu0 0.0
        %1276 = vmatpush1.msra.mxu0 0.0
        %1277 = vmatprep.subr.mxu0 0.0
        %1278 = vmatpush1.msra.mxu0 0.0
        %1279 = vmatprep.subr.mxu0 0.0
        %1280 = vmatpush1.msra.mxu0 0.0
        %1281 = vmatprep.subr.mxu0 0.0
        %1282 = vmatpush1.msra.mxu0 0.0
        %1283 = vmatprep.subr.mxu0 0.0
        %1284 = vmatpush1.msra.mxu0 0.0
        %1285 = vmatprep.subr.mxu0 0.0
        %1286 = vmatpush1.msra.mxu0 0.0
        %1287 = vmatprep.subr.mxu0 0.0
        %1288 = vmatpush1.msra.mxu0 0.0
        %1289 = vmatprep.subr.mxu0 0.0
        %1290 = vmatpush1.msra.mxu0 0.0
        %1291 = vmatprep.subr.mxu0 0.0
        %1292 = vmatpush1.msra.mxu0 0.0
        %1293 = vmatprep.subr.mxu0 0.0
        %1294 = vmatpush1.msra.mxu0 0.0
        %1295 = vmatprep.subr.mxu0 0.0
        %1296 = vmatpush1.msra.mxu0 0.0
        %1297 = vmatprep.subr.mxu0 0.0
        %1298 = vmatpush1.msra.mxu0 0.0
        %1299 = vmatprep.subr.mxu0 0.0
        %1300 = vmatpush1.msra.mxu0 0.0
        %1301 = vmatprep.subr.mxu0 0.0
        %1302 = vmatpush1.msra.mxu0 0.0
        %1303 = vmatprep.subr.mxu0 0.0
        %1304 = vmatpush1.msra.mxu0 0.0
        %1305 = vmatprep.subr.mxu0 0.0
        %1306 = vmatpush1.msra.mxu0 0.0
        %1307 = vmatprep.subr.mxu0 0.0
        %1308 = vmatpush1.msra.mxu0 0.0
        %1309 = vmatprep.subr.mxu0 0.0
        %1310 = vmatpush1.msra.mxu0 0.0
        %1311 = vmatprep.subr.mxu0 0.0
        %1312 = vmatpush1.msra.mxu0 0.0
        %1313 = vmatprep.subr.mxu0 0.0
        %1314 = vmatpush1.msra.mxu0 0.0
        %1315 = vmatprep.subr.mxu0 0.0
        %1316 = vmatpush1.msra.mxu0 0.0
        %1317 = vmatprep.subr.mxu0 0.0
        %1318 = vmatpush1.msra.mxu0 0.0
        %1319 = vmatprep.subr.mxu0 0.0
        %1320 = vmatpush1.msra.mxu0 0.0
        %1321 = vmatprep.subr.mxu0 0.0
        %1322 = vmatpush1.msra.mxu0 0.0
        %1323 = vmatprep.mubr.f32.mxu0 0.0
        %v1324 = vand.u32 %v882, 4294901760
        %1325 = vmatmul.mubr.f32.gmra.mrb[0].mxu0 %v1324
        %v1326 = vpop.f32.mrb[0].mxu0
        %v1327 = vadd.f32 %v1255, %v1326
        %v1328 = vpop.f32.mrb[0].mxu0
        %1329 = vdwg.mxu0
        %v1330 = vmul.f32 %v871, %v1327
        %v1331 = vld [vmem:[#allocation11] sm:$0xf]
        %v1332 = vld [vmem:[#allocation13] sm:$0xf]
        %1334 = vset.pattern.permute.xlu0 0
        %1335 = vperm.xlu0 %1334, %v1332
        %v1336 = vpop.permute.xlu0 %1335
        %v1339 = vsel %vm421, %v1331, 0
        %v1342 = vsel %vm388, %v1330, 0
        %1344 = vmatprep.subr.mxu0 0.0
        %v1345 = vand.u32 %v1342, 4294901760
        %1346 = vmatpush1.msra.mxu0 %v1345
        %1347 = vmatprep.subr.mxu0 0.0
        %1348 = vmatpush1.msra.mxu0 0.0
        %1349 = vmatprep.subr.mxu0 0.0
        %1350 = vmatpush1.msra.mxu0 0.0
        %1351 = vmatprep.subr.mxu0 0.0
        %1352 = vmatpush1.msra.mxu0 0.0
        %1353 = vmatprep.subr.mxu0 0.0
        %1354 = vmatpush1.msra.mxu0 0.0
        %1355 = vmatprep.subr.mxu0 0.0
        %1356 = vmatpush1.msra.mxu0 0.0
        %1357 = vmatprep.subr.mxu0 0.0
        %1358 = vmatpush1.msra.mxu0 0.0
        %1359 = vmatprep.subr.mxu0 0.0
        %1360 = vmatpush1.msra.mxu0 0.0
        %1361 = vmatprep.subr.mxu0 0.0
        %1362 = vmatpush1.msra.mxu0 0.0
        %1363 = vmatprep.subr.mxu0 0.0
        %1364 = vmatpush1.msra.mxu0 0.0
        %1365 = vmatprep.subr.mxu0 0.0
        %1366 = vmatpush1.msra.mxu0 0.0
        %1367 = vmatprep.subr.mxu0 0.0
        %1368 = vmatpush1.msra.mxu0 0.0
        %1369 = vmatprep.subr.mxu0 0.0
        %1370 = vmatpush1.msra.mxu0 0.0
        %1371 = vmatprep.subr.mxu0 0.0
        %1372 = vmatpush1.msra.mxu0 0.0
        %1373 = vmatprep.subr.mxu0 0.0
        %1374 = vmatpush1.msra.mxu0 0.0
        %1375 = vmatprep.subr.mxu0 0.0
        %1376 = vmatpush1.msra.mxu0 0.0
        %1377 = vmatprep.subr.mxu0 0.0
        %1378 = vmatpush1.msra.mxu0 0.0
        %1379 = vmatprep.subr.mxu0 0.0
        %1380 = vmatpush1.msra.mxu0 0.0
        %1381 = vmatprep.subr.mxu0 0.0
        %1382 = vmatpush1.msra.mxu0 0.0
        %1383 = vmatprep.subr.mxu0 0.0
        %1384 = vmatpush1.msra.mxu0 0.0
        %1385 = vmatprep.subr.mxu0 0.0
        %1386 = vmatpush1.msra.mxu0 0.0
        %1387 = vmatprep.subr.mxu0 0.0
        %1388 = vmatpush1.msra.mxu0 0.0
        %1389 = vmatprep.subr.mxu0 0.0
        %1390 = vmatpush1.msra.mxu0 0.0
        %1391 = vmatprep.subr.mxu0 0.0
        %1392 = vmatpush1.msra.mxu0 0.0
        %1393 = vmatprep.subr.mxu0 0.0
        %1394 = vmatpush1.msra.mxu0 0.0
        %1395 = vmatprep.subr.mxu0 0.0
        %1396 = vmatpush1.msra.mxu0 0.0
        %1397 = vmatprep.subr.mxu0 0.0
        %1398 = vmatpush1.msra.mxu0 0.0
        %1399 = vmatprep.subr.mxu0 0.0
        %1400 = vmatpush1.msra.mxu0 0.0
        %1401 = vmatprep.subr.mxu0 0.0
        %1402 = vmatpush1.msra.mxu0 0.0
        %1403 = vmatprep.subr.mxu0 0.0
        %1404 = vmatpush1.msra.mxu0 0.0
        %1405 = vmatprep.subr.mxu0 0.0
        %1406 = vmatpush1.msra.mxu0 0.0
        %1407 = vmatprep.subr.mxu0 0.0
        %1408 = vmatpush1.msra.mxu0 0.0
        %1409 = vmatprep.mubr.f32.mxu0 0.0
        %v1410 = vand.u32 %v1339, 4294901760
        %v1411 = vsub.f32 %v1339, %v1410
        %v1412 = vand.u32 %v1411, 4294901760
        %v1413 = vsub.f32 %v1411, %v1412
        %v1414 = vand.u32 %v1413, 4294901760
        %1415 = vmatmul.mubr.f32.gmra.mrb[0].mxu0 %v1414
        %v1416 = vpop.f32.mrb[0].mxu0
        %v1417 = vadd.f32 %v1336, %v1416
        %v1418 = vpop.f32.mrb[0].mxu0
        %1419 = vdwg.mxu0
        %1420 = vmatprep.subr.mxu0 0.0
        %v1421 = vand.u32 %v1342, 4294901760
        %v1422 = vsub.f32 %v1342, %v1421
        %v1423 = vand.u32 %v1422, 4294901760
        %v1424 = vsub.f32 %v1422, %v1423
        %v1425 = vand.u32 %v1424, 4294901760
        %1426 = vmatpush1.msra.mxu0 %v1425
        %1427 = vmatprep.subr.mxu0 0.0
        %1428 = vmatpush1.msra.mxu0 0.0
        %1429 = vmatprep.subr.mxu0 0.0
        %1430 = vmatpush1.msra.mxu0 0.0
        %1431 = vmatprep.subr.mxu0 0.0
        %1432 = vmatpush1.msra.mxu0 0.0
        %1433 = vmatprep.subr.mxu0 0.0
        %1434 = vmatpush1.msra.mxu0 0.0
        %1435 = vmatprep.subr.mxu0 0.0
        %1436 = vmatpush1.msra.mxu0 0.0
        %1437 = vmatprep.subr.mxu0 0.0
        %1438 = vmatpush1.msra.mxu0 0.0
        %1439 = vmatprep.subr.mxu0 0.0
        %1440 = vmatpush1.msra.mxu0 0.0
        %1441 = vmatprep.subr.mxu0 0.0
        %1442 = vmatpush1.msra.mxu0 0.0
        %1443 = vmatprep.subr.mxu0 0.0
        %1444 = vmatpush1.msra.mxu0 0.0
        %1445 = vmatprep.subr.mxu0 0.0
        %1446 = vmatpush1.msra.mxu0 0.0
        %1447 = vmatprep.subr.mxu0 0.0
        %1448 = vmatpush1.msra.mxu0 0.0
        %1449 = vmatprep.subr.mxu0 0.0
        %1450 = vmatpush1.msra.mxu0 0.0
        %1451 = vmatprep.subr.mxu0 0.0
        %1452 = vmatpush1.msra.mxu0 0.0
        %1453 = vmatprep.subr.mxu0 0.0
        %1454 = vmatpush1.msra.mxu0 0.0
        %1455 = vmatprep.subr.mxu0 0.0
        %1456 = vmatpush1.msra.mxu0 0.0
        %1457 = vmatprep.subr.mxu0 0.0
        %1458 = vmatpush1.msra.mxu0 0.0
        %1459 = vmatprep.subr.mxu0 0.0
        %1460 = vmatpush1.msra.mxu0 0.0
        %1461 = vmatprep.subr.mxu0 0.0
        %1462 = vmatpush1.msra.mxu0 0.0
        %1463 = vmatprep.subr.mxu0 0.0
        %1464 = vmatpush1.msra.mxu0 0.0
        %1465 = vmatprep.subr.mxu0 0.0
        %1466 = vmatpush1.msra.mxu0 0.0
        %1467 = vmatprep.subr.mxu0 0.0
        %1468 = vmatpush1.msra.mxu0 0.0
        %1469 = vmatprep.subr.mxu0 0.0
        %1470 = vmatpush1.msra.mxu0 0.0
        %1471 = vmatprep.subr.mxu0 0.0
        %1472 = vmatpush1.msra.mxu0 0.0
        %1473 = vmatprep.subr.mxu0 0.0
        %1474 = vmatpush1.msra.mxu0 0.0
        %1475 = vmatprep.subr.mxu0 0.0
        %1476 = vmatpush1.msra.mxu0 0.0
        %1477 = vmatprep.subr.mxu0 0.0
        %1478 = vmatpush1.msra.mxu0 0.0
        %1479 = vmatprep.subr.mxu0 0.0
        %1480 = vmatpush1.msra.mxu0 0.0
        %1481 = vmatprep.subr.mxu0 0.0
        %1482 = vmatpush1.msra.mxu0 0.0
        %1483 = vmatprep.subr.mxu0 0.0
        %1484 = vmatpush1.msra.mxu0 0.0
        %1485 = vmatprep.subr.mxu0 0.0
        %1486 = vmatpush1.msra.mxu0 0.0
        %1487 = vmatprep.subr.mxu0 0.0
        %1488 = vmatpush1.msra.mxu0 0.0
        %1489 = vmatprep.mubr.f32.mxu0 0.0
        %v1490 = vand.u32 %v1339, 4294901760
        %1491 = vmatmul.mubr.f32.gmra.mrb[0].mxu0 %v1490
        %v1492 = vpop.f32.mrb[0].mxu0
        %v1493 = vadd.f32 %v1417, %v1492
        %v1494 = vpop.f32.mrb[0].mxu0
        %1495 = vdwg.mxu0
        %1496 = vmatprep.subr.mxu0 0.0
        %v1497 = vand.u32 %v1342, 4294901760
        %v1498 = vsub.f32 %v1342, %v1497
        %1499 = vmatpush1.msra.mxu0 %v1498
        %1500 = vmatprep.subr.mxu0 0.0
        %1501 = vmatpush1.msra.mxu0 0.0
        %1502 = vmatprep.subr.mxu0 0.0
        %1503 = vmatpush1.msra.mxu0 0.0
        %1504 = vmatprep.subr.mxu0 0.0
        %1505 = vmatpush1.msra.mxu0 0.0
        %1506 = vmatprep.subr.mxu0 0.0
        %1507 = vmatpush1.msra.mxu0 0.0
        %1508 = vmatprep.subr.mxu0 0.0
        %1509 = vmatpush1.msra.mxu0 0.0
        %1510 = vmatprep.subr.mxu0 0.0
        %1511 = vmatpush1.msra.mxu0 0.0
        %1512 = vmatprep.subr.mxu0 0.0
        %1513 = vmatpush1.msra.mxu0 0.0
        %1514 = vmatprep.subr.mxu0 0.0
        %1515 = vmatpush1.msra.mxu0 0.0
        %1516 = vmatprep.subr.mxu0 0.0
        %1517 = vmatpush1.msra.mxu0 0.0
        %1518 = vmatprep.subr.mxu0 0.0
        %1519 = vmatpush1.msra.mxu0 0.0
        %1520 = vmatprep.subr.mxu0 0.0
        %1521 = vmatpush1.msra.mxu0 0.0
        %1522 = vmatprep.subr.mxu0 0.0
        %1523 = vmatpush1.msra.mxu0 0.0
        %1524 = vmatprep.subr.mxu0 0.0
        %1525 = vmatpush1.msra.mxu0 0.0
        %1526 = vmatprep.subr.mxu0 0.0
        %1527 = vmatpush1.msra.mxu0 0.0
        %1528 = vmatprep.subr.mxu0 0.0
        %1529 = vmatpush1.msra.mxu0 0.0
        %1530 = vmatprep.subr.mxu0 0.0
        %1531 = vmatpush1.msra.mxu0 0.0
        %1532 = vmatprep.subr.mxu0 0.0
        %1533 = vmatpush1.msra.mxu0 0.0
        %1534 = vmatprep.subr.mxu0 0.0
        %1535 = vmatpush1.msra.mxu0 0.0
        %1536 = vmatprep.subr.mxu0 0.0
        %1537 = vmatpush1.msra.mxu0 0.0
        %1538 = vmatprep.subr.mxu0 0.0
        %1539 = vmatpush1.msra.mxu0 0.0
        %1540 = vmatprep.subr.mxu0 0.0
        %1541 = vmatpush1.msra.mxu0 0.0
        %1542 = vmatprep.subr.mxu0 0.0
        %1543 = vmatpush1.msra.mxu0 0.0
        %1544 = vmatprep.subr.mxu0 0.0
        %1545 = vmatpush1.msra.mxu0 0.0
        %1546 = vmatprep.subr.mxu0 0.0
        %1547 = vmatpush1.msra.mxu0 0.0
        %1548 = vmatprep.subr.mxu0 0.0
        %1549 = vmatpush1.msra.mxu0 0.0
        %1550 = vmatprep.subr.mxu0 0.0
        %1551 = vmatpush1.msra.mxu0 0.0
        %1552 = vmatprep.subr.mxu0 0.0
        %1553 = vmatpush1.msra.mxu0 0.0
        %1554 = vmatprep.subr.mxu0 0.0
        %1555 = vmatpush1.msra.mxu0 0.0
        %1556 = vmatprep.subr.mxu0 0.0
        %1557 = vmatpush1.msra.mxu0 0.0
        %1558 = vmatprep.subr.mxu0 0.0
        %1559 = vmatpush1.msra.mxu0 0.0
        %1560 = vmatprep.subr.mxu0 0.0
        %1561 = vmatpush1.msra.mxu0 0.0
        %1562 = vmatprep.mubr.f32.mxu0 0.0
        %v1563 = vand.u32 %v1339, 4294901760
        %v1564 = vsub.f32 %v1339, %v1563
        %1565 = vmatmul.mubr.f32.gmra.mrb[0].mxu0 %v1564
        %v1566 = vpop.f32.mrb[0].mxu0
        %v1567 = vadd.f32 %v1493, %v1566
        %v1568 = vpop.f32.mrb[0].mxu0
        %1569 = vdwg.mxu0
        %1570 = vmatprep.subr.mxu0 0.0
        %v1571 = vand.u32 %v1342, 4294901760
        %1572 = vmatpush1.msra.mxu0 %v1571
        %1573 = vmatprep.subr.mxu0 0.0
        %1574 = vmatpush1.msra.mxu0 0.0
        %1575 = vmatprep.subr.mxu0 0.0
        %1576 = vmatpush1.msra.mxu0 0.0
        %1577 = vmatprep.subr.mxu0 0.0
        %1578 = vmatpush1.msra.mxu0 0.0
        %1579 = vmatprep.subr.mxu0 0.0
        %1580 = vmatpush1.msra.mxu0 0.0
        %1581 = vmatprep.subr.mxu0 0.0
        %1582 = vmatpush1.msra.mxu0 0.0
        %1583 = vmatprep.subr.mxu0 0.0
        %1584 = vmatpush1.msra.mxu0 0.0
        %1585 = vmatprep.subr.mxu0 0.0
        %1586 = vmatpush1.msra.mxu0 0.0
        %1587 = vmatprep.subr.mxu0 0.0
        %1588 = vmatpush1.msra.mxu0 0.0
        %1589 = vmatprep.subr.mxu0 0.0
        %1590 = vmatpush1.msra.mxu0 0.0
        %1591 = vmatprep.subr.mxu0 0.0
        %1592 = vmatpush1.msra.mxu0 0.0
        %1593 = vmatprep.subr.mxu0 0.0
        %1594 = vmatpush1.msra.mxu0 0.0
        %1595 = vmatprep.subr.mxu0 0.0
        %1596 = vmatpush1.msra.mxu0 0.0
        %1597 = vmatprep.subr.mxu0 0.0
        %1598 = vmatpush1.msra.mxu0 0.0
        %1599 = vmatprep.subr.mxu0 0.0
        %1600 = vmatpush1.msra.mxu0 0.0
        %1601 = vmatprep.subr.mxu0 0.0
        %1602 = vmatpush1.msra.mxu0 0.0
        %1603 = vmatprep.subr.mxu0 0.0
        %1604 = vmatpush1.msra.mxu0 0.0
        %1605 = vmatprep.subr.mxu0 0.0
        %1606 = vmatpush1.msra.mxu0 0.0
        %1607 = vmatprep.subr.mxu0 0.0
        %1608 = vmatpush1.msra.mxu0 0.0
        %1609 = vmatprep.subr.mxu0 0.0
        %1610 = vmatpush1.msra.mxu0 0.0
        %1611 = vmatprep.subr.mxu0 0.0
        %1612 = vmatpush1.msra.mxu0 0.0
        %1613 = vmatprep.subr.mxu0 0.0
        %1614 = vmatpush1.msra.mxu0 0.0
        %1615 = vmatprep.subr.mxu0 0.0
        %1616 = vmatpush1.msra.mxu0 0.0
        %1617 = vmatprep.subr.mxu0 0.0
        %1618 = vmatpush1.msra.mxu0 0.0
        %1619 = vmatprep.subr.mxu0 0.0
        %1620 = vmatpush1.msra.mxu0 0.0
        %1621 = vmatprep.subr.mxu0 0.0
        %1622 = vmatpush1.msra.mxu0 0.0
        %1623 = vmatprep.subr.mxu0 0.0
        %1624 = vmatpush1.msra.mxu0 0.0
        %1625 = vmatprep.subr.mxu0 0.0
        %1626 = vmatpush1.msra.mxu0 0.0
        %1627 = vmatprep.subr.mxu0 0.0
        %1628 = vmatpush1.msra.mxu0 0.0
        %1629 = vmatprep.subr.mxu0 0.0
        %1630 = vmatpush1.msra.mxu0 0.0
        %1631 = vmatprep.subr.mxu0 0.0
        %1632 = vmatpush1.msra.mxu0 0.0
        %1633 = vmatprep.subr.mxu0 0.0
        %1634 = vmatpush1.msra.mxu0 0.0
        %1635 = vmatprep.mubr.f32.mxu0 0.0
        %v1636 = vand.u32 %v1339, 4294901760
        %v1637 = vsub.f32 %v1339, %v1636
        %v1638 = vand.u32 %v1637, 4294901760
        %1639 = vmatmul.mubr.f32.gmra.mrb[0].mxu0 %v1638
        %v1640 = vpop.f32.mrb[0].mxu0
        %v1641 = vadd.f32 %v1567, %v1640
        %v1642 = vpop.f32.mrb[0].mxu0
        %1643 = vdwg.mxu0
        %1644 = vmatprep.subr.mxu0 0.0
        %v1645 = vand.u32 %v1342, 4294901760
        %v1646 = vsub.f32 %v1342, %v1645
        %v1647 = vand.u32 %v1646, 4294901760
        %1648 = vmatpush1.msra.mxu0 %v1647
        %1649 = vmatprep.subr.mxu0 0.0
        %1650 = vmatpush1.msra.mxu0 0.0
        %1651 = vmatprep.subr.mxu0 0.0
        %1652 = vmatpush1.msra.mxu0 0.0
        %1653 = vmatprep.subr.mxu0 0.0
        %1654 = vmatpush1.msra.mxu0 0.0
        %1655 = vmatprep.subr.mxu0 0.0
        %1656 = vmatpush1.msra.mxu0 0.0
        %1657 = vmatprep.subr.mxu0 0.0
        %1658 = vmatpush1.msra.mxu0 0.0
        %1659 = vmatprep.subr.mxu0 0.0
        %1660 = vmatpush1.msra.mxu0 0.0
        %1661 = vmatprep.subr.mxu0 0.0
        %1662 = vmatpush1.msra.mxu0 0.0
        %1663 = vmatprep.subr.mxu0 0.0
        %1664 = vmatpush1.msra.mxu0 0.0
        %1665 = vmatprep.subr.mxu0 0.0
        %1666 = vmatpush1.msra.mxu0 0.0
        %1667 = vmatprep.subr.mxu0 0.0
        %1668 = vmatpush1.msra.mxu0 0.0
        %1669 = vmatprep.subr.mxu0 0.0
        %1670 = vmatpush1.msra.mxu0 0.0
        %1671 = vmatprep.subr.mxu0 0.0
        %1672 = vmatpush1.msra.mxu0 0.0
        %1673 = vmatprep.subr.mxu0 0.0
        %1674 = vmatpush1.msra.mxu0 0.0
        %1675 = vmatprep.subr.mxu0 0.0
        %1676 = vmatpush1.msra.mxu0 0.0
        %1677 = vmatprep.subr.mxu0 0.0
        %1678 = vmatpush1.msra.mxu0 0.0
        %1679 = vmatprep.subr.mxu0 0.0
        %1680 = vmatpush1.msra.mxu0 0.0
        %1681 = vmatprep.subr.mxu0 0.0
        %1682 = vmatpush1.msra.mxu0 0.0
        %1683 = vmatprep.subr.mxu0 0.0
        %1684 = vmatpush1.msra.mxu0 0.0
        %1685 = vmatprep.subr.mxu0 0.0
        %1686 = vmatpush1.msra.mxu0 0.0
        %1687 = vmatprep.subr.mxu0 0.0
        %1688 = vmatpush1.msra.mxu0 0.0
        %1689 = vmatprep.subr.mxu0 0.0
        %1690 = vmatpush1.msra.mxu0 0.0
        %1691 = vmatprep.subr.mxu0 0.0
        %1692 = vmatpush1.msra.mxu0 0.0
        %1693 = vmatprep.subr.mxu0 0.0
        %1694 = vmatpush1.msra.mxu0 0.0
        %1695 = vmatprep.subr.mxu0 0.0
        %1696 = vmatpush1.msra.mxu0 0.0
        %1697 = vmatprep.subr.mxu0 0.0
        %1698 = vmatpush1.msra.mxu0 0.0
        %1699 = vmatprep.subr.mxu0 0.0
        %1700 = vmatpush1.msra.mxu0 0.0
        %1701 = vmatprep.subr.mxu0 0.0
        %1702 = vmatpush1.msra.mxu0 0.0
        %1703 = vmatprep.subr.mxu0 0.0
        %1704 = vmatpush1.msra.mxu0 0.0
        %1705 = vmatprep.subr.mxu0 0.0
        %1706 = vmatpush1.msra.mxu0 0.0
        %1707 = vmatprep.subr.mxu0 0.0
        %1708 = vmatpush1.msra.mxu0 0.0
        %1709 = vmatprep.subr.mxu0 0.0
        %1710 = vmatpush1.msra.mxu0 0.0
        %1711 = vmatprep.mubr.f32.mxu0 0.0
        %v1712 = vand.u32 %v1339, 4294901760
        %1713 = vmatmul.mubr.f32.gmra.mrb[0].mxu0 %v1712
        %v1714 = vpop.f32.mrb[0].mxu0
        %v1715 = vadd.f32 %v1641, %v1714
        %v1716 = vpop.f32.mrb[0].mxu0
        %1717 = vdwg.mxu0
        %1718 = vmatprep.subr.mxu0 0.0
        %v1719 = vand.u32 %v1342, 4294901760
        %1720 = vmatpush1.msra.mxu0 %v1719
        %1721 = vmatprep.subr.mxu0 0.0
        %1722 = vmatpush1.msra.mxu0 0.0
        %1723 = vmatprep.subr.mxu0 0.0
        %1724 = vmatpush1.msra.mxu0 0.0
        %1725 = vmatprep.subr.mxu0 0.0
        %1726 = vmatpush1.msra.mxu0 0.0
        %1727 = vmatprep.subr.mxu0 0.0
        %1728 = vmatpush1.msra.mxu0 0.0
        %1729 = vmatprep.subr.mxu0 0.0
        %1730 = vmatpush1.msra.mxu0 0.0
        %1731 = vmatprep.subr.mxu0 0.0
        %1732 = vmatpush1.msra.mxu0 0.0
        %1733 = vmatprep.subr.mxu0 0.0
        %1734 = vmatpush1.msra.mxu0 0.0
        %1735 = vmatprep.subr.mxu0 0.0
        %1736 = vmatpush1.msra.mxu0 0.0
        %1737 = vmatprep.subr.mxu0 0.0
        %1738 = vmatpush1.msra.mxu0 0.0
        %1739 = vmatprep.subr.mxu0 0.0
        %1740 = vmatpush1.msra.mxu0 0.0
        %1741 = vmatprep.subr.mxu0 0.0
        %1742 = vmatpush1.msra.mxu0 0.0
        %1743 = vmatprep.subr.mxu0 0.0
        %1744 = vmatpush1.msra.mxu0 0.0
        %1745 = vmatprep.subr.mxu0 0.0
        %1746 = vmatpush1.msra.mxu0 0.0
        %1747 = vmatprep.subr.mxu0 0.0
        %1748 = vmatpush1.msra.mxu0 0.0
        %1749 = vmatprep.subr.mxu0 0.0
        %1750 = vmatpush1.msra.mxu0 0.0
        %1751 = vmatprep.subr.mxu0 0.0
        %1752 = vmatpush1.msra.mxu0 0.0
        %1753 = vmatprep.subr.mxu0 0.0
        %1754 = vmatpush1.msra.mxu0 0.0
        %1755 = vmatprep.subr.mxu0 0.0
        %1756 = vmatpush1.msra.mxu0 0.0
        %1757 = vmatprep.subr.mxu0 0.0
        %1758 = vmatpush1.msra.mxu0 0.0
        %1759 = vmatprep.subr.mxu0 0.0
        %1760 = vmatpush1.msra.mxu0 0.0
        %1761 = vmatprep.subr.mxu0 0.0
        %1762 = vmatpush1.msra.mxu0 0.0
        %1763 = vmatprep.subr.mxu0 0.0
        %1764 = vmatpush1.msra.mxu0 0.0
        %1765 = vmatprep.subr.mxu0 0.0
        %1766 = vmatpush1.msra.mxu0 0.0
        %1767 = vmatprep.subr.mxu0 0.0
        %1768 = vmatpush1.msra.mxu0 0.0
        %1769 = vmatprep.subr.mxu0 0.0
        %1770 = vmatpush1.msra.mxu0 0.0
        %1771 = vmatprep.subr.mxu0 0.0
        %1772 = vmatpush1.msra.mxu0 0.0
        %1773 = vmatprep.subr.mxu0 0.0
        %1774 = vmatpush1.msra.mxu0 0.0
        %1775 = vmatprep.subr.mxu0 0.0
        %1776 = vmatpush1.msra.mxu0 0.0
        %1777 = vmatprep.subr.mxu0 0.0
        %1778 = vmatpush1.msra.mxu0 0.0
        %1779 = vmatprep.subr.mxu0 0.0
        %1780 = vmatpush1.msra.mxu0 0.0
        %1781 = vmatprep.subr.mxu0 0.0
        %1782 = vmatpush1.msra.mxu0 0.0
        %1783 = vmatprep.mubr.f32.mxu0 0.0
        %v1784 = vand.u32 %v1339, 4294901760
        %1785 = vmatmul.mubr.f32.gmra.mrb[0].mxu0 %v1784
        %v1786 = vpop.f32.mrb[0].mxu0
        %v1787 = vadd.f32 %v1715, %v1786
        %v1788 = vpop.f32.mrb[0].mxu0
        %1789 = vdwg.mxu0
        %v1790 = vadd.f32 %v387, %v1787
        %1791 = vst [vmem:[%s386] sm:$0xf] %v1790
        %s1792 = sand.u32 %s203, 1
        %s1793 = scalar_lea.sflag [#allocation4], %s1792
        %s1794 = sand.u32 %s203, 1
        %s1795 = smul.addr %s1794, 4
        %s1796 = scalar_lea.vmem [#allocation14], %s1795
        // Predicated region
        $region77: #{tpu_custom_call.1} parent=47 // pred_check
          %p1797 = pneg %p213
        $region78: #{tpu_custom_call.1} parent=47 // pred_check_branch
          %1799 = sbr.rel (%p1797) target = $region80
        $region79: #{tpu_custom_call.1} parent=47 // pred_region
          %s1801 = ssub.s32 64, 64
          %1802 = vsyncadd %s1793, %s1801
          %s1803 = smul.addr %s31, 2
          %s1804 = sadd.s32 %s32, %s1803
          %s1805 = smul.addr %s1804, 64
          %s1806 = scalar_lea.hbm %s7, %s1805
          %s1808 = sshll.u32 %s1796, 4
          %s1809 = int_to_ptr.vmem [resolvable:$true] %s1808
          %1811 = dma.vmem_to_hbm [thread:$0]  %s1809, 64, %s1806, %s1793
        $region80: #{tpu_custom_call.1} parent=47 // pred_fallthru
          _
      $region48: #{tpu_custom_call.1} parent=5 // pred_fallthru
        _
      %p1812 = scmp.le.s32.totalorder 2, %s22
      // Predicated region
      $region81: #{tpu_custom_call.1} parent=5 // pred_check
        %p1813 = pneg %p1812
      $region82: #{tpu_custom_call.1} parent=5 // pred_check_branch
        %1815 = sbr.rel (%p1813) target = $region84
      $region83: #{tpu_custom_call.1} parent=5 // pred_region
        %s1816 = ssub.s32 %s22, 2
        // Predicated region
        $region85: #{tpu_custom_call.1} parent=83 // pred_check
          %p1817 = pneg %p219
        $region86: #{tpu_custom_call.1} parent=83 // pred_check_branch
          %1819 = sbr.rel (%p1817) target = $region88
        $region87: #{tpu_custom_call.1} parent=83 // pred_region
          %s1820 = sand.u32 %s204, 1
          %s1821 = scalar_lea.sflag [#allocation4], %s1820
          %s1822 = sand.u32 %s204, 1
          %s1823 = smul.addr %s1822, 4
          %s1824 = scalar_lea.vmem [#allocation14], %s1823
          %1825 = dma.done %s1821, 64
        $region88: #{tpu_custom_call.1} parent=83 // pred_fallthru
          _
      $region84: #{tpu_custom_call.1} parent=5 // pred_fallthru
        _
    $region6: #{tpu_custom_call.1} parent=1 // loop_footer
      %s26 = sadd.s32 1, %s22
    $region7: #{tpu_custom_call.1} parent=1 // loop_footer_branch
      %21 = sbr.rel target = $region3
    $region8: #{tpu_custom_call.1} parent=1 // loop_exit
      _
    %1826 = vsyncpa [#allocation3], 1
    %s1827 = scalar_lea.sflag [#allocation3], 1
    %1828 = vsyncpa %s1827, 1
    %1829 = vsyncpa [#allocation6], 1
    %1830 = vsyncpa [#allocation9], 1
    %1831 = vsyncpa [#allocation12], 1
    %1832 = vsyncpa [#allocation4], 1
    %s1833 = scalar_lea.sflag [#allocation4], 1
    %1834 = vsyncpa %s1833, 1

</llo_original>
